<compile_context>
chip_gen: v5e
topology: v5e:2x2
jax: 0.10.0
libtpu: 0.0.40
codegen_flags: <defaults>
</compile_context>

<pallas_src>
import jax
import jax.numpy as jnp
from jax.experimental import pallas as pl
from jax.experimental.pallas import tpu as pltpu


_MAX_TM = 2048  # row-tile cap (multiple of 16); ~18 MiB VMEM footprint at E=512


def _round_up(x, m):
    return ((x + m - 1) // m) * m


def _tuner_mlp_kernel(x_ref, w1_ref, b1_ref, w2_ref, b2_ref, o_ref):
    # x / w1 / w2 arrive as bf16 (native MXU operands); both dots accumulate
    # in f32. Bias-add / ReLU stay in f32 on the VPU (no bf16 VPU on v5e).
    h = jnp.dot(x_ref[...], w1_ref[...], preferred_element_type=jnp.float32)
    h = jnp.maximum(h + b1_ref[...], 0.0)
    o = jnp.dot(h.astype(jnp.bfloat16), w2_ref[...],
                preferred_element_type=jnp.float32)
    o_ref[...] = o + b2_ref[...]


def tuner_mlp(x2d, w1, b1, w2, b2, *, tm=None):
    """x2d: (M, E) bf16 -> (M, 256) f32 via Linear/ReLU/Linear.

    w1 (E,768) / w2 (768,256) must already be bf16 (see prepare_params);
    b1 / b2 are f32 shaped (1,768) / (1,256).
    """
    M, E = x2d.shape
    H = w1.shape[1]
    O = w2.shape[1]
    assert w1.dtype == jnp.bfloat16 and w2.dtype == jnp.bfloat16
    x2d = x2d.astype(jnp.bfloat16)  # no-op when the producer already emits bf16

    # Row tile: multiple of 16 (bf16 sublane packing). For small/medium M,
    # split into >= 2 tiles so a dual-TC chip (v7x) always has work for both
    # cores; for large M use the big tile to amortize per-step overhead.
    if tm is None:
        if M <= 2 * _MAX_TM:
            tm = _round_up(max(1, -(-M // 2)), 16)
        else:
            tm = _MAX_TM
    tm = max(16, _round_up(tm, 16))

    m_pad = _round_up(M, tm)
    if m_pad != M:
        # Padded rows compute ReLU(b1) @ w2 + b2 garbage that is sliced off
        # below (harmless: never reduced before slicing).
        x2d = jnp.pad(x2d, ((0, m_pad - M), (0, 0)))

    grid = (m_pad // tm,)

    # Scoped-VMEM limit from the actual tile footprint (v5e default is 16 MiB;
    # keep the request <= 64 MiB so it also fits a v7x TensorCore).
    vmem_bytes = (
        2 * tm * E * 2                              # x tiles, double-buffered bf16
        + 2 * tm * O * 4                            # out tiles, double-buffered f32
        + 2 * ((E * H + H * O) * 2 + (H + O) * 4)   # weights/biases (worst case 2x)
        + tm * H * 4 + tm * O * 4                   # in-kernel f32 intermediates
    )
    vmem_limit = min(max(32 << 20, int(vmem_bytes * 1.5)), 64 << 20)

    flops = 2 * m_pad * (E * H + H * O)
    bytes_accessed = (m_pad * E * 2                 # bf16 activations
                      + E * H * 2 + H * O * 2       # bf16 weights
                      + H * 4 + O * 4               # f32 biases
                      + m_pad * O * 4)              # f32 output

    out = pl.pallas_call(
        _tuner_mlp_kernel,
        out_shape=jax.ShapeDtypeStruct((m_pad, O), jnp.float32),
        grid_spec=pltpu.PrefetchScalarGridSpec(
            num_scalar_prefetch=0,
            grid=grid,
            in_specs=[
                pl.BlockSpec((tm, E), lambda i: (i, 0)),   # activations: tiled over M
                pl.BlockSpec((E, H), lambda i: (0, 0)),    # w1: resident across grid
                pl.BlockSpec((1, H), lambda i: (0, 0)),    # b1
                pl.BlockSpec((H, O), lambda i: (0, 0)),    # w2
                pl.BlockSpec((1, O), lambda i: (0, 0)),    # b2
            ],
            out_specs=pl.BlockSpec((tm, O), lambda i: (i, 0)),
        ),
        compiler_params=pltpu.CompilerParams(
            # Independent row tiles. On v7x, pltpu.CORE_PARALLEL here shards
            # the (>= 2) tiles across both TensorCores.
            dimension_semantics=("parallel",),
            vmem_limit_bytes=vmem_limit,
        ),
        cost_estimate=pl.CostEstimate(
            flops=flops, transcendentals=0, bytes_accessed=bytes_accessed),
    )(x2d, w1, b1, w2, b2)

    return out if m_pad == M else out[:M]


def prepare_params(params):
    """One-time (outside the jit'd forward) conversion: bf16 weights for the
    MXU, biases reshaped to (1, N) f32 for a clean lane-dim broadcast."""
    H = params["w1"].shape[1]
    O = params["w2"].shape[1]
    return {
        "w1": params["w1"].astype(jnp.bfloat16),
        "b1": params["b1"].reshape(1, H).astype(jnp.float32),
        "w2": params["w2"].astype(jnp.bfloat16),
        "b2": params["b2"].reshape(1, O).astype(jnp.float32),
    }


def tuner_forward(X, params):
    """X: (B, 3, E) -> (anchor, pos, neg), each (B, 256) float32.

    params must come from prepare_params (bf16 weights, reshaped biases)."""
    B, T, E = X.shape
    assert T == 3
    # Row-major reshape only (no transpose): row r = b*3 + t holds X[b, t, :].
    # Cast to bf16 so the kernel reads half the activation bytes; ideally the
    # producer already emits bf16 and this is a no-op.
    x2d = X.reshape(B * T, E).astype(jnp.bfloat16)
    out = tuner_mlp(x2d, params["w1"], params["b1"], params["w2"], params["b2"])
    out = out.reshape(B, T, -1)
    return out[:, 0, :], out[:, 1, :], out[:, 2, :]


def init_params(key, embedding_size=512, hidden=768, out=256):
    # Deterministic synthetic init (matches nn.Linear uniform(-1/sqrt(fan_in), ...)).
    k1, k2, k3, k4 = jax.random.split(key, 4)
    lim1 = 1.0 / jnp.sqrt(embedding_size)
    lim2 = 1.0 / jnp.sqrt(hidden)
    return {
        "w1": jax.random.uniform(k1, (embedding_size, hidden), jnp.float32, -lim1, lim1),
        "b1": jax.random.uniform(k2, (hidden,), jnp.float32, -lim1, lim1),
        "w2": jax.random.uniform(k3, (hidden, out), jnp.float32, -lim2, lim2),
        "b2": jax.random.uniform(k4, (out,), jnp.float32, -lim2, lim2),
    }


if __name__ == "__main__":
    key = jax.random.PRNGKey(0)
    k_param, k_x = jax.random.split(key)

    B = 8           # batch
    E = 512         # embedding_size (small, consistent with the module's param)
    params_f32 = init_params(k_param, embedding_size=E)
    params = prepare_params(params_f32)   # one-time bf16 conversion, outside jit

    X = jax.random.normal(k_x, (B, 3, E), dtype=jnp.float32)

    fwd = jax.jit(lambda x: tuner_forward(x, params))
    anchor, pos, neg = fwd(X)
    jax.block_until_ready((anchor, pos, neg))

    # Pure-JAX f32 reference check (bf16 activations + weights in the kernel
    # -> loosened tolerance).
    def ref_single(x):
        h = jnp.maximum(x @ params_f32["w1"] + params_f32["b1"], 0.0)
        return h @ params_f32["w2"] + params_f32["b2"]

    ra = ref_single(X[:, 0, :])
    rp = ref_single(X[:, 1, :])
    rn = ref_single(X[:, 2, :])
    assert anchor.shape == (B, 256) and pos.shape == (B, 256) and neg.shape == (B, 256)
    assert jnp.allclose(anchor, ra, atol=6e-2, rtol=6e-2)
    assert jnp.allclose(pos, rp, atol=6e-2, rtol=6e-2)
    assert jnp.allclose(neg, rn, atol=6e-2, rtol=6e-2)

    print("KERNEL_OK")
</pallas_src>

<mosaic_0001>
module attributes {stable_mosaic.version = 11 : i64} {
  func.func @_tuner_mlp_kernel(%arg0: i32, %arg1: memref<16x512xbf16, #tpu.memory_space<vmem>>, %arg2: memref<512x768xbf16, #tpu.memory_space<vmem>>, %arg3: memref<1x768xf32, #tpu.memory_space<vmem>>, %arg4: memref<768x256xbf16, #tpu.memory_space<vmem>>, %arg5: memref<1x256xf32, #tpu.memory_space<vmem>>, %arg6: memref<16x256xf32, #tpu.memory_space<vmem>>) attributes {dimension_semantics = [#tpu.dimension_semantics<parallel>], iteration_bounds = array<i64: 2>, scalar_prefetch = 0 : i64, scratch_operands = 0 : i64, tpu.core_type = #tpu.core_type<tc>, window_params = [{transform_indices = @transform_0, window_bounds = array<i64: 16, 512>}, {pipeline_mode = #tpu.pipeline_mode<synchronous>, transform_indices = @transform_1, window_bounds = array<i64: 512, 768>}, {pipeline_mode = #tpu.pipeline_mode<synchronous>, transform_indices = @transform_2, window_bounds = array<i64: 1, 768>}, {pipeline_mode = #tpu.pipeline_mode<synchronous>, transform_indices = @transform_3, window_bounds = array<i64: 768, 256>}, {pipeline_mode = #tpu.pipeline_mode<synchronous>, transform_indices = @transform_4, window_bounds = array<i64: 1, 256>}, {transform_indices = @transform_5, window_bounds = array<i64: 16, 256>}]} {
    %c0 = arith.constant 0 : index
    %c0_0 = arith.constant 0 : index
    %0 = vector.load %arg1[%c0, %c0_0] : memref<16x512xbf16, #tpu.memory_space<vmem>>, vector<16x512xbf16>
    %c0_1 = arith.constant 0 : index
    %c0_2 = arith.constant 0 : index
    %1 = vector.load %arg2[%c0_1, %c0_2] : memref<512x768xbf16, #tpu.memory_space<vmem>>, vector<512x768xbf16>
    %cst = arith.constant dense<0.000000e+00> : vector<16x768xf32>
    %2 = tpu.matmul %0, %1, %cst {dimension_numbers = #tpu.dot_dimension_numbers<[1], [0], [0], [1], [0, 0, 1, 1], [], []>} : vector<16x512xbf16>, vector<512x768xbf16>, vector<16x768xf32> -> vector<16x768xf32>
    %c0_3 = arith.constant 0 : index
    %c0_4 = arith.constant 0 : index
    %3 = vector.load %arg3[%c0_3, %c0_4] : memref<1x768xf32, #tpu.memory_space<vmem>>, vector<1x768xf32>
    %4 = vector.broadcast %3 : vector<1x768xf32> to vector<16x768xf32>
    %5 = arith.addf %2, %4 : vector<16x768xf32>
    %cst_5 = arith.constant 0.000000e+00 : f32
    %6 = vector.broadcast %cst_5 : f32 to vector<16x768xf32>
    %7 = arith.maximumf %5, %6 : vector<16x768xf32>
    %8 = arith.truncf %7 : vector<16x768xf32> to vector<16x768xbf16>
    %c0_6 = arith.constant 0 : index
    %c0_7 = arith.constant 0 : index
    %9 = vector.load %arg4[%c0_6, %c0_7] : memref<768x256xbf16, #tpu.memory_space<vmem>>, vector<768x256xbf16>
    %cst_8 = arith.constant dense<0.000000e+00> : vector<16x256xf32>
    %10 = tpu.matmul %8, %9, %cst_8 {dimension_numbers = #tpu.dot_dimension_numbers<[1], [0], [0], [1], [0, 0, 1, 1], [], []>} : vector<16x768xbf16>, vector<768x256xbf16>, vector<16x256xf32> -> vector<16x256xf32>
    %c0_9 = arith.constant 0 : index
    %c0_10 = arith.constant 0 : index
    %11 = vector.load %arg5[%c0_9, %c0_10] : memref<1x256xf32, #tpu.memory_space<vmem>>, vector<1x256xf32>
    %12 = vector.broadcast %11 : vector<1x256xf32> to vector<16x256xf32>
    %13 = arith.addf %10, %12 : vector<16x256xf32>
    %c0_11 = arith.constant 0 : index
    %c0_12 = arith.constant 0 : index
    %14 = vector.load %arg6[%c0_11, %c0_12] : memref<16x256xf32, #tpu.memory_space<vmem>>, vector<16x256xf32>
    tpu.vector_store %arg6[%c0_11, %c0_12], %13 {strides = array<i32>} : memref<16x256xf32, #tpu.memory_space<vmem>>, vector<16x256xf32>,
    return
  }
  func.func @transform_0(%arg0: i32) -> (i32, i32) {
    %c0_i32 = arith.constant 0 : i32
    %c0_i32_0 = arith.constant 0 : i32
    return %arg0, %c0_i32 : i32, i32
  }
  func.func @transform_1(%arg0: i32) -> (i32, i32) {
    %c0_i32 = arith.constant 0 : i32
    %c0_i32_0 = arith.constant 0 : i32
    %c0_i32_1 = arith.constant 0 : i32
    return %c0_i32, %c0_i32_0 : i32, i32
  }
  func.func @transform_2(%arg0: i32) -> (i32, i32) {
    %c0_i32 = arith.constant 0 : i32
    %c0_i32_0 = arith.constant 0 : i32
    %c0_i32_1 = arith.constant 0 : i32
    return %c0_i32, %c0_i32_0 : i32, i32
  }
  func.func @transform_3(%arg0: i32) -> (i32, i32) {
    %c0_i32 = arith.constant 0 : i32
    %c0_i32_0 = arith.constant 0 : i32
    %c0_i32_1 = arith.constant 0 : i32
    return %c0_i32, %c0_i32_0 : i32, i32
  }
  func.func @transform_4(%arg0: i32) -> (i32, i32) {
    %c0_i32 = arith.constant 0 : i32
    %c0_i32_0 = arith.constant 0 : i32
    %c0_i32_1 = arith.constant 0 : i32
    return %c0_i32, %c0_i32_0 : i32, i32
  }
  func.func @transform_5(%arg0: i32) -> (i32, i32) {
    %c0_i32 = arith.constant 0 : i32
    %c0_i32_0 = arith.constant 0 : i32
    return %arg0, %c0_i32 : i32, i32
  }
}

</mosaic_0001>

<llo_original>
// kernel: _lambda_.1
$region0: #{_lambda_.1}
  #allocation0 [shape = 'u32[]', space=smem, size = 0x4, offset = 0x4, fixed_abs, tag = 'smem constant byte address 0x4 - core index']
  #allocation1 [shape = 'u32[72,128]{1,0:T(1,128)}', space=vmem, size = 0x9000, scoped, tag = 'internal scratch']
  %s0 = inlined_call_operand.vmem [shape: bf16[32,512], index: 0, kind: input, shape index: {}]
  %s1 = inlined_call_operand.hbm [shape: bf16[512,768], index: 1, kind: input, shape index: {}]
  %s2 = inlined_call_operand.vmem [shape: f32[1,768], index: 2, kind: input, shape index: {}]
  %s3 = inlined_call_operand.hbm [shape: bf16[768,256], index: 3, kind: input, shape index: {}]
  %s4 = inlined_call_operand.vmem [shape: f32[1,256], index: 4, kind: input, shape index: {}]
  %s5 = inlined_call_operand.vmem [shape: f32[32,256], index: 5, kind: output, shape index: {}]
  %s6 = sld [smem:[#allocation0]]
  $region61: #{_lambda_.1} parent=0
    _
  %s8 = ssub.s32 1, %s6
  %s9 = scalar_select 0, %s8, %s6
  $region1: #{_lambda_.1} parent=0
    #allocation2 [shape = 'u8[786432]{0}', space=vmem, size = 0xc0000, scoped, tag = 'input window, operand 1, single buffered']
    #allocation3 [shape = 's32[2]{0}', space=sflag, size = 0x8, scoped, tag = 'scoped memory for _lambda_.1']
    #allocation4 [shape = 'u8[393216]{0}', space=vmem, size = 0x60000, scoped, tag = 'input window, operand 3, single buffered']
    #allocation5 [shape = 's32[1]{0}', space=sflag, size = 0x4, scoped, tag = 'scoped memory for _lambda_.1']
    %10 = vsyncpa [#allocation3], 0
    %11 = vsyncpa [#allocation5], 0
    loop: start=0, step=1, limit=4
    $region2: #{_lambda_.1} parent=1 // loop_pre_header
      _
    $region3: #{_lambda_.1} parent=1 // loop_header
      %s13 = sphi 0, %s17
      %p14 = scmp.ge.s32.totalorder %s13, 4
      %s23 = sphi 0, %s25
      %s26 = sphi 0, %s23
      %s27 = sphi 0, %s26
      %s43 = sphi 0, %s27
      %s47 = sphi 0, %s47
      %s49 = sphi 0, %s47
      %s50 = sphi 0, %s49
      %s64 = sphi 0, %s50
      %s68 = sphi 0, %s68
      %s70 = sphi 0, %s68
      %s71 = sphi 0, %s70
      %s85 = sphi 0, %s71
      %s89 = sphi 0, %s89
      %s91 = sphi 0, %s89
      %s92 = sphi 0, %s91
      %s106 = sphi 0, %s92
      %s110 = sphi 0, %s110
      %s112 = sphi 0, %s110
      %s113 = sphi 0, %s112
      %s127 = sphi 0, %s113
      %s133 = sphi 0, %s135
      %s136 = sphi 0, %s133
      %s137 = sphi 0, %s136
      %s153 = sphi 0, %s137
    $region4: #{_lambda_.1} parent=1 // loop_header_branch
      %16 = sbr.rel (%p14) target = $region8
    $region5: #{_lambda_.1} parent=1 // loop_body
      %s18 = ssub.s32 %s13, 1
      %s19 = ssub.s32 %s13, 2
      %s20 = sadd.s32 %s13, 1
      %s21 = ssub.s32 %s13, %s20
      %p22 = scmp.eq.s32.totalorder %s21, 0
      %s24 = sadd.s32 %s23, 1
      %s25 = scalar_select %p22, %s23, %s24
      %p28 = pneg %p22
      %p29 = scmp.eq.s32.totalorder %s13, 1
      %p30 = por %p28, %p29
      %p31 = scmp.ne.s32.totalorder %s23, %s26
      %p32 = scmp.eq.s32.totalorder %s13, 0
      %p33 = por %p31, %p32
      %p34 = scmp.ne.s32.totalorder %s23, %s26
      %p35 = scmp.eq.s32.totalorder %s18, 1
      %p36 = por %p34, %p35
      %p37 = scmp.ne.s32.totalorder %s26, %s27
      %p38 = scmp.eq.s32.totalorder %s18, 0
      %p39 = por %p37, %p38
      %p40 = scmp.ne.s32.totalorder %s26, %s27
      %p41 = scmp.eq.s32.totalorder %s19, 1
      %p42 = por %p40, %p41
      %p44 = scmp.ne.s32.totalorder %s27, %s43
      %p45 = scmp.eq.s32.totalorder %s19, 0
      %p46 = por %p44, %p45
      %s48 = sadd.s32 %s47, 1
      %p51 = scmp.eq.s32.totalorder %s13, 1
      %p52 = scmp.ne.s32.totalorder %s47, %s49
      %p53 = scmp.eq.s32.totalorder %s13, 0
      %p54 = por %p52, %p53
      %p55 = scmp.ne.s32.totalorder %s47, %s49
      %p56 = scmp.eq.s32.totalorder %s18, 1
      %p57 = por %p55, %p56
      %p58 = scmp.ne.s32.totalorder %s49, %s50
      %p59 = scmp.eq.s32.totalorder %s18, 0
      %p60 = por %p58, %p59
      %p61 = scmp.ne.s32.totalorder %s49, %s50
      %p62 = scmp.eq.s32.totalorder %s19, 1
      %p63 = por %p61, %p62
      %p65 = scmp.ne.s32.totalorder %s50, %s64
      %p66 = scmp.eq.s32.totalorder %s19, 0
      %p67 = por %p65, %p66
      %s69 = sadd.s32 %s68, 1
      %p72 = scmp.eq.s32.totalorder %s13, 1
      %p73 = scmp.ne.s32.totalorder %s68, %s70
      %p74 = scmp.eq.s32.totalorder %s13, 0
      %p75 = por %p73, %p74
      %p76 = scmp.ne.s32.totalorder %s68, %s70
      %p77 = scmp.eq.s32.totalorder %s18, 1
      %p78 = por %p76, %p77
      %p79 = scmp.ne.s32.totalorder %s70, %s71
      %p80 = scmp.eq.s32.totalorder %s18, 0
      %p81 = por %p79, %p80
      %p82 = scmp.ne.s32.totalorder %s70, %s71
      %p83 = scmp.eq.s32.totalorder %s19, 1
      %p84 = por %p82, %p83
      %p86 = scmp.ne.s32.totalorder %s71, %s85
      %p87 = scmp.eq.s32.totalorder %s19, 0
      %p88 = por %p86, %p87
      %s90 = sadd.s32 %s89, 1
      %p93 = scmp.eq.s32.totalorder %s13, 1
      %p94 = scmp.ne.s32.totalorder %s89, %s91
      %p95 = scmp.eq.s32.totalorder %s13, 0
      %p96 = por %p94, %p95
      %p97 = scmp.ne.s32.totalorder %s89, %s91
      %p98 = scmp.eq.s32.totalorder %s18, 1
      %p99 = por %p97, %p98
      %p100 = scmp.ne.s32.totalorder %s91, %s92
      %p101 = scmp.eq.s32.totalorder %s18, 0
      %p102 = por %p100, %p101
      %p103 = scmp.ne.s32.totalorder %s91, %s92
      %p104 = scmp.eq.s32.totalorder %s19, 1
      %p105 = por %p103, %p104
      %p107 = scmp.ne.s32.totalorder %s92, %s106
      %p108 = scmp.eq.s32.totalorder %s19, 0
      %p109 = por %p107, %p108
      %s111 = sadd.s32 %s110, 1
      %p114 = scmp.eq.s32.totalorder %s13, 1
      %p115 = scmp.ne.s32.totalorder %s110, %s112
      %p116 = scmp.eq.s32.totalorder %s13, 0
      %p117 = por %p115, %p116
      %p118 = scmp.ne.s32.totalorder %s110, %s112
      %p119 = scmp.eq.s32.totalorder %s18, 1
      %p120 = por %p118, %p119
      %p121 = scmp.ne.s32.totalorder %s112, %s113
      %p122 = scmp.eq.s32.totalorder %s18, 0
      %p123 = por %p121, %p122
      %p124 = scmp.ne.s32.totalorder %s112, %s113
      %p125 = scmp.eq.s32.totalorder %s19, 1
      %p126 = por %p124, %p125
      %p128 = scmp.ne.s32.totalorder %s113, %s127
      %p129 = scmp.eq.s32.totalorder %s19, 0
      %p130 = por %p128, %p129
      %s131 = ssub.s32 %s13, %s20
      %p132 = scmp.eq.s32.totalorder %s131, 0
      %s134 = sadd.s32 %s133, 1
      %s135 = scalar_select %p132, %s133, %s134
      %p138 = pneg %p132
      %p139 = scmp.eq.s32.totalorder %s13, 1
      %p140 = por %p138, %p139
      %p141 = scmp.ne.s32.totalorder %s133, %s136
      %p142 = scmp.eq.s32.totalorder %s13, 0
      %p143 = por %p141, %p142
      %p144 = scmp.ne.s32.totalorder %s133, %s136
      %p145 = scmp.eq.s32.totalorder %s18, 1
      %p146 = por %p144, %p145
      %p147 = scmp.ne.s32.totalorder %s136, %s137
      %p148 = scmp.eq.s32.totalorder %s18, 0
      %p149 = por %p147, %p148
      %p150 = scmp.ne.s32.totalorder %s136, %s137
      %p151 = scmp.eq.s32.totalorder %s19, 1
      %p152 = por %p150, %p151
      %p154 = scmp.ne.s32.totalorder %s137, %s153
      %p155 = scmp.eq.s32.totalorder %s19, 0
      %p156 = por %p154, %p155
      %p157 = scmp.le.s32.totalorder 1, %s13
      %p158 = scmp.lt.s32.totalorder %s13, 3
      %p159 = pnand %p157, %p158
      %p160 = pneg %p159
      // Predicated region
      $region9: #{_lambda_.1} parent=5 // pred_check
        _
      $region10: #{_lambda_.1} parent=5 // pred_check_branch
        %162 = sbr.rel (%p159) target = $region12
      $region11: #{_lambda_.1} parent=5 // pred_region
        %s163 = ssub.s32 %s13, 1
        // Predicated region
        $region13: #{_lambda_.1} parent=11 // pred_check
          %p164 = pneg %p60
        $region14: #{_lambda_.1} parent=11 // pred_check_branch
          %166 = sbr.rel (%p164) target = $region16
        $region15: #{_lambda_.1} parent=11 // pred_region
          %168 = vsyncadd [#allocation3], 0
          %s169 = sshll.u32 %s1, 4
          %s170 = int_to_ptr.hbm [resolvable:$true] %s169
          %s171 = sshll.u32 [#allocation2], 4
          %s172 = int_to_ptr.vmem [resolvable:$true] %s171
          %177 = dma.hbm_to_vmem [thread:$0]  %s170, 24576, %s172, [#allocation3], 384, 384, 24
        $region16: #{_lambda_.1} parent=11 // pred_fallthru
          _
        // Predicated region
        $region17: #{_lambda_.1} parent=11 // pred_check
          %p178 = pneg %p81
        $region18: #{_lambda_.1} parent=11 // pred_check_branch
          %180 = sbr.rel (%p178) target = $region20
        $region19: #{_lambda_.1} parent=11 // pred_region
          _
        $region20: #{_lambda_.1} parent=11 // pred_fallthru
          _
        // Predicated region
        $region21: #{_lambda_.1} parent=11 // pred_check
          %p181 = pneg %p102
        $region22: #{_lambda_.1} parent=11 // pred_check_branch
          %183 = sbr.rel (%p181) target = $region24
        $region23: #{_lambda_.1} parent=11 // pred_region
          %185 = vsyncadd [#allocation5], 0
          %s186 = sshll.u32 %s3, 4
          %s187 = int_to_ptr.hbm [resolvable:$true] %s186
          %s188 = sshll.u32 [#allocation4], 4
          %s189 = int_to_ptr.vmem [resolvable:$true] %s188
          %194 = dma.hbm_to_vmem [thread:$0]  %s187, 12288, %s189, [#allocation5], 128, 128, 8
        $region24: #{_lambda_.1} parent=11 // pred_fallthru
          _
        // Predicated region
        $region25: #{_lambda_.1} parent=11 // pred_check
          %p195 = pneg %p123
        $region26: #{_lambda_.1} parent=11 // pred_check_branch
          %197 = sbr.rel (%p195) target = $region28
        $region27: #{_lambda_.1} parent=11 // pred_region
          _
        $region28: #{_lambda_.1} parent=11 // pred_fallthru
          _
      $region12: #{_lambda_.1} parent=5 // pred_fallthru
        _
      %p198 = scmp.lt.s32.totalorder %s13, 2
      // Predicated region
      $region29: #{_lambda_.1} parent=5 // pred_check
        %p199 = pneg %p198
      $region30: #{_lambda_.1} parent=5 // pred_check_branch
        %201 = sbr.rel (%p199) target = $region32
      $region31: #{_lambda_.1} parent=5 // pred_region
        // Predicated region
        $region33: #{_lambda_.1} parent=31 // pred_check
          %p202 = pneg %p33
        $region34: #{_lambda_.1} parent=31 // pred_check_branch
          %204 = sbr.rel (%p202) target = $region36
        $region35: #{_lambda_.1} parent=31 // pred_region
          %s205 = smul.u32 2, %s13
          %p206 = scmp.lt.s32.totalorder %s205, 3
          %s207 = scalar_select %p206, %s205, 3
          %s208 = smul.addr %s207, 4
          %s209 = smul.addr %s208, 4
          %s210 = scalar_lea.vmem %s0, %s209
          %s211 = smul.u32 2, %s13
        $region36: #{_lambda_.1} parent=31 // pred_fallthru
          _
      $region32: #{_lambda_.1} parent=5 // pred_fallthru
        _
      %p212 = scmp.le.s32.totalorder 1, %s13
      %p213 = scmp.lt.s32.totalorder %s13, 3
      %p214 = pnand %p212, %p213
      %p215 = pneg %p214
      // Predicated region
      $region37: #{_lambda_.1} parent=5 // pred_check
        _
      $region38: #{_lambda_.1} parent=5 // pred_check_branch
        %217 = sbr.rel (%p214) target = $region40
      $region39: #{_lambda_.1} parent=5 // pred_region
        %s218 = ssub.s32 %s13, 1
        // Predicated region
        $region41: #{_lambda_.1} parent=39 // pred_check
          %p219 = pneg %p60
        $region42: #{_lambda_.1} parent=39 // pred_check_branch
          %221 = sbr.rel (%p219) target = $region44
        $region43: #{_lambda_.1} parent=39 // pred_region
          %223 = dma.done [#allocation3], 24576
        $region44: #{_lambda_.1} parent=39 // pred_fallthru
          _
        // Predicated region
        $region45: #{_lambda_.1} parent=39 // pred_check
          %p224 = pneg %p102
        $region46: #{_lambda_.1} parent=39 // pred_check_branch
          %226 = sbr.rel (%p224) target = $region48
        $region47: #{_lambda_.1} parent=39 // pred_region
          %228 = dma.done [#allocation5], 12288
        $region48: #{_lambda_.1} parent=39 // pred_fallthru
          _
        %s229 = smul.u32 2, %s18
        %p230 = scmp.lt.s32.totalorder %s229, 3
        %s231 = scalar_select %p230, %s229, 3
        %s232 = smul.addr %s231, 4
        %s233 = smul.addr %s232, 4
        %s234 = scalar_lea.vmem %s0, %s233
        %p235 = pneg %p39
        %p236 = pneg %p36
        %p237 = pneg %p60
        %p238 = pneg %p57
        %p239 = pneg %p81
        %p240 = pneg %p78
        %p241 = pneg %p102
        %p242 = pneg %p99
        %p243 = pneg %p123
        %p244 = pneg %p120
        %p245 = pneg %p149
        %p246 = pneg %p146
        %s247 = smul.u32 2, %s18
        %p248 = scmp.lt.s32.totalorder %s247, 3
        %s249 = scalar_select %p248, %s247, 3
        %s250 = smul.addr %s249, 2
        %s251 = smul.addr %s250, 8
        %s252 = scalar_lea.vmem %s5, %s251
        %s253 = smul.u32 2, %s18
        %p254 = scmp.lt.s32.totalorder %s253, 3
        %s255 = scalar_select %p254, %s253, 3
        %s256 = smul.addr %s255, 4
        %s257 = smul.addr %s256, 4
        %s258 = scalar_lea.vmem %s0, %s257
        %s259 = smul.u32 2, %s18
        %s260 = smul.u32 2, %s18
        %p261 = scmp.lt.s32.totalorder %s260, 3
        %s262 = scalar_select %p261, %s260, 3
        %s263 = smul.addr %s262, 2
        %s264 = smul.addr %s263, 8
        %s265 = scalar_lea.vmem %s5, %s264
        %s266 = smul.u32 2, %s18
        %v267 = vld [vmem:[%s258] sm:$0xff]
        %v268 = vld [vmem:[%s258 + $0x8] sm:$0xff]
        %v269 = vld [vmem:[%s258 + $0x10] sm:$0xff]
        %v270 = vld [vmem:[%s258 + $0x18] sm:$0xff]
        %v271 = vld [vmem:[#allocation2] sm:$0xff]
        %v272 = vld [vmem:[#allocation2 + $0x8] sm:$0xff]
        %v273 = vld [vmem:[#allocation2 + $0x10] sm:$0xff]
        %v274 = vld [vmem:[#allocation2 + $0x18] sm:$0xff]
        %v275 = vld [vmem:[#allocation2 + $0x20] sm:$0xff]
        %v276 = vld [vmem:[#allocation2 + $0x28] sm:$0xff]
        %v277 = vld [vmem:[#allocation2 + $0x30] sm:$0xff]
        %v278 = vld [vmem:[#allocation2 + $0x38] sm:$0xff]
        %v279 = vld [vmem:[#allocation2 + $0x40] sm:$0xff]
        %v280 = vld [vmem:[#allocation2 + $0x48] sm:$0xff]
        %v281 = vld [vmem:[#allocation2 + $0x50] sm:$0xff]
        %v282 = vld [vmem:[#allocation2 + $0x58] sm:$0xff]
        %v283 = vld [vmem:[#allocation2 + $0x60] sm:$0xff]
        %v284 = vld [vmem:[#allocation2 + $0x68] sm:$0xff]
        %v285 = vld [vmem:[#allocation2 + $0x70] sm:$0xff]
        %v286 = vld [vmem:[#allocation2 + $0x78] sm:$0xff]
        %v287 = vld [vmem:[#allocation2 + $0x80] sm:$0xff]
        %v288 = vld [vmem:[#allocation2 + $0x88] sm:$0xff]
        %v289 = vld [vmem:[#allocation2 + $0x90] sm:$0xff]
        %v290 = vld [vmem:[#allocation2 + $0x98] sm:$0xff]
        %v291 = vld [vmem:[#allocation2 + $0xa0] sm:$0xff]
        %v292 = vld [vmem:[#allocation2 + $0xa8] sm:$0xff]
        %v293 = vld [vmem:[#allocation2 + $0xb0] sm:$0xff]
        %v294 = vld [vmem:[#allocation2 + $0xb8] sm:$0xff]
        %v295 = vld [vmem:[#allocation2 + $0xc0] sm:$0xff]
        %v296 = vld [vmem:[#allocation2 + $0xc8] sm:$0xff]
        %v297 = vld [vmem:[#allocation2 + $0xd0] sm:$0xff]
        %v298 = vld [vmem:[#allocation2 + $0xd8] sm:$0xff]
        %v299 = vld [vmem:[#allocation2 + $0xe0] sm:$0xff]
        %v300 = vld [vmem:[#allocation2 + $0xe8] sm:$0xff]
        %v301 = vld [vmem:[#allocation2 + $0xf0] sm:$0xff]
        %v302 = vld [vmem:[#allocation2 + $0xf8] sm:$0xff]
        %v303 = vld [vmem:[#allocation2 + $0x100] sm:$0xff]
        %v304 = vld [vmem:[#allocation2 + $0x108] sm:$0xff]
        %v305 = vld [vmem:[#allocation2 + $0x110] sm:$0xff]
        %v306 = vld [vmem:[#allocation2 + $0x118] sm:$0xff]
        %v307 = vld [vmem:[#allocation2 + $0x120] sm:$0xff]
        %v308 = vld [vmem:[#allocation2 + $0x128] sm:$0xff]
        %v309 = vld [vmem:[#allocation2 + $0x130] sm:$0xff]
        %v310 = vld [vmem:[#allocation2 + $0x138] sm:$0xff]
        %v311 = vld [vmem:[#allocation2 + $0x140] sm:$0xff]
        %v312 = vld [vmem:[#allocation2 + $0x148] sm:$0xff]
        %v313 = vld [vmem:[#allocation2 + $0x150] sm:$0xff]
        %v314 = vld [vmem:[#allocation2 + $0x158] sm:$0xff]
        %v315 = vld [vmem:[#allocation2 + $0x160] sm:$0xff]
        %v316 = vld [vmem:[#allocation2 + $0x168] sm:$0xff]
        %v317 = vld [vmem:[#allocation2 + $0x170] sm:$0xff]
        %v318 = vld [vmem:[#allocation2 + $0x178] sm:$0xff]
        %v319 = vld [vmem:[#allocation2 + $0x180] sm:$0xff]
        %v320 = vld [vmem:[#allocation2 + $0x188] sm:$0xff]
        %v321 = vld [vmem:[#allocation2 + $0x190] sm:$0xff]
        %v322 = vld [vmem:[#allocation2 + $0x198] sm:$0xff]
        %v323 = vld [vmem:[#allocation2 + $0x1a0] sm:$0xff]
        %v324 = vld [vmem:[#allocation2 + $0x1a8] sm:$0xff]
        %v325 = vld [vmem:[#allocation2 + $0x1b0] sm:$0xff]
        %v326 = vld [vmem:[#allocation2 + $0x1b8] sm:$0xff]
        %v327 = vld [vmem:[#allocation2 + $0x1c0] sm:$0xff]
        %v328 = vld [vmem:[#allocation2 + $0x1c8] sm:$0xff]
        %v329 = vld [vmem:[#allocation2 + $0x1d0] sm:$0xff]
        %v330 = vld [vmem:[#allocation2 + $0x1d8] sm:$0xff]
        %v331 = vld [vmem:[#allocation2 + $0x1e0] sm:$0xff]
        %v332 = vld [vmem:[#allocation2 + $0x1e8] sm:$0xff]
        %v333 = vld [vmem:[#allocation2 + $0x1f0] sm:$0xff]
        %v334 = vld [vmem:[#allocation2 + $0x1f8] sm:$0xff]
        %v335 = vld [vmem:[#allocation2 + $0x200] sm:$0xff]
        %v336 = vld [vmem:[#allocation2 + $0x208] sm:$0xff]
        %v337 = vld [vmem:[#allocation2 + $0x210] sm:$0xff]
        %v338 = vld [vmem:[#allocation2 + $0x218] sm:$0xff]
        %v339 = vld [vmem:[#allocation2 + $0x220] sm:$0xff]
        %v340 = vld [vmem:[#allocation2 + $0x228] sm:$0xff]
        %v341 = vld [vmem:[#allocation2 + $0x230] sm:$0xff]
        %v342 = vld [vmem:[#allocation2 + $0x238] sm:$0xff]
        %v343 = vld [vmem:[#allocation2 + $0x240] sm:$0xff]
        %v344 = vld [vmem:[#allocation2 + $0x248] sm:$0xff]
        %v345 = vld [vmem:[#allocation2 + $0x250] sm:$0xff]
        %v346 = vld [vmem:[#allocation2 + $0x258] sm:$0xff]
        %v347 = vld [vmem:[#allocation2 + $0x260] sm:$0xff]
        %v348 = vld [vmem:[#allocation2 + $0x268] sm:$0xff]
        %v349 = vld [vmem:[#allocation2 + $0x270] sm:$0xff]
        %v350 = vld [vmem:[#allocation2 + $0x278] sm:$0xff]
        %v351 = vld [vmem:[#allocation2 + $0x280] sm:$0xff]
        %v352 = vld [vmem:[#allocation2 + $0x288] sm:$0xff]
        %v353 = vld [vmem:[#allocation2 + $0x290] sm:$0xff]
        %v354 = vld [vmem:[#allocation2 + $0x298] sm:$0xff]
        %v355 = vld [vmem:[#allocation2 + $0x2a0] sm:$0xff]
        %v356 = vld [vmem:[#allocation2 + $0x2a8] sm:$0xff]
        %v357 = vld [vmem:[#allocation2 + $0x2b0] sm:$0xff]
        %v358 = vld [vmem:[#allocation2 + $0x2b8] sm:$0xff]
        %v359 = vld [vmem:[#allocation2 + $0x2c0] sm:$0xff]
        %v360 = vld [vmem:[#allocation2 + $0x2c8] sm:$0xff]
        %v361 = vld [vmem:[#allocation2 + $0x2d0] sm:$0xff]
        %v362 = vld [vmem:[#allocation2 + $0x2d8] sm:$0xff]
        %v363 = vld [vmem:[#allocation2 + $0x2e0] sm:$0xff]
        %v364 = vld [vmem:[#allocation2 + $0x2e8] sm:$0xff]
        %v365 = vld [vmem:[#allocation2 + $0x2f0] sm:$0xff]
        %v366 = vld [vmem:[#allocation2 + $0x2f8] sm:$0xff]
        %v367 = vld [vmem:[#allocation2 + $0x300] sm:$0xff]
        %v368 = vld [vmem:[#allocation2 + $0x308] sm:$0xff]
        %v369 = vld [vmem:[#allocation2 + $0x310] sm:$0xff]
        %v370 = vld [vmem:[#allocation2 + $0x318] sm:$0xff]
        %v371 = vld [vmem:[#allocation2 + $0x320] sm:$0xff]
        %v372 = vld [vmem:[#allocation2 + $0x328] sm:$0xff]
        %v373 = vld [vmem:[#allocation2 + $0x330] sm:$0xff]
        %v374 = vld [vmem:[#allocation2 + $0x338] sm:$0xff]
        %v375 = vld [vmem:[#allocation2 + $0x340] sm:$0xff]
        %v376 = vld [vmem:[#allocation2 + $0x348] sm:$0xff]
        %v377 = vld [vmem:[#allocation2 + $0x350] sm:$0xff]
        %v378 = vld [vmem:[#allocation2 + $0x358] sm:$0xff]
        %v379 = vld [vmem:[#allocation2 + $0x360] sm:$0xff]
        %v380 = vld [vmem:[#allocation2 + $0x368] sm:$0xff]
        %v381 = vld [vmem:[#allocation2 + $0x370] sm:$0xff]
        %v382 = vld [vmem:[#allocation2 + $0x378] sm:$0xff]
        %v383 = vld [vmem:[#allocation2 + $0x380] sm:$0xff]
        %v384 = vld [vmem:[#allocation2 + $0x388] sm:$0xff]
        %v385 = vld [vmem:[#allocation2 + $0x390] sm:$0xff]
        %v386 = vld [vmem:[#allocation2 + $0x398] sm:$0xff]
        %v387 = vld [vmem:[#allocation2 + $0x3a0] sm:$0xff]
        %v388 = vld [vmem:[#allocation2 + $0x3a8] sm:$0xff]
        %v389 = vld [vmem:[#allocation2 + $0x3b0] sm:$0xff]
        %v390 = vld [vmem:[#allocation2 + $0x3b8] sm:$0xff]
        %v391 = vld [vmem:[#allocation2 + $0x3c0] sm:$0xff]
        %v392 = vld [vmem:[#allocation2 + $0x3c8] sm:$0xff]
        %v393 = vld [vmem:[#allocation2 + $0x3d0] sm:$0xff]
        %v394 = vld [vmem:[#allocation2 + $0x3d8] sm:$0xff]
        %v395 = vld [vmem:[#allocation2 + $0x3e0] sm:$0xff]
        %v396 = vld [vmem:[#allocation2 + $0x3e8] sm:$0xff]
        %v397 = vld [vmem:[#allocation2 + $0x3f0] sm:$0xff]
        %v398 = vld [vmem:[#allocation2 + $0x3f8] sm:$0xff]
        %v399 = vld [vmem:[#allocation2 + $0x400] sm:$0xff]
        %v400 = vld [vmem:[#allocation2 + $0x408] sm:$0xff]
        %v401 = vld [vmem:[#allocation2 + $0x410] sm:$0xff]
        %v402 = vld [vmem:[#allocation2 + $0x418] sm:$0xff]
        %v403 = vld [vmem:[#allocation2 + $0x420] sm:$0xff]
        %v404 = vld [vmem:[#allocation2 + $0x428] sm:$0xff]
        %v405 = vld [vmem:[#allocation2 + $0x430] sm:$0xff]
        %v406 = vld [vmem:[#allocation2 + $0x438] sm:$0xff]
        %v407 = vld [vmem:[#allocation2 + $0x440] sm:$0xff]
        %v408 = vld [vmem:[#allocation2 + $0x448] sm:$0xff]
        %v409 = vld [vmem:[#allocation2 + $0x450] sm:$0xff]
        %v410 = vld [vmem:[#allocation2 + $0x458] sm:$0xff]
        %v411 = vld [vmem:[#allocation2 + $0x460] sm:$0xff]
        %v412 = vld [vmem:[#allocation2 + $0x468] sm:$0xff]
        %v413 = vld [vmem:[#allocation2 + $0x470] sm:$0xff]
        %v414 = vld [vmem:[#allocation2 + $0x478] sm:$0xff]
        %v415 = vld [vmem:[#allocation2 + $0x480] sm:$0xff]
        %v416 = vld [vmem:[#allocation2 + $0x488] sm:$0xff]
        %v417 = vld [vmem:[#allocation2 + $0x490] sm:$0xff]
        %v418 = vld [vmem:[#allocation2 + $0x498] sm:$0xff]
        %v419 = vld [vmem:[#allocation2 + $0x4a0] sm:$0xff]
        %v420 = vld [vmem:[#allocation2 + $0x4a8] sm:$0xff]
        %v421 = vld [vmem:[#allocation2 + $0x4b0] sm:$0xff]
        %v422 = vld [vmem:[#allocation2 + $0x4b8] sm:$0xff]
        %v423 = vld [vmem:[#allocation2 + $0x4c0] sm:$0xff]
        %v424 = vld [vmem:[#allocation2 + $0x4c8] sm:$0xff]
        %v425 = vld [vmem:[#allocation2 + $0x4d0] sm:$0xff]
        %v426 = vld [vmem:[#allocation2 + $0x4d8] sm:$0xff]
        %v427 = vld [vmem:[#allocation2 + $0x4e0] sm:$0xff]
        %v428 = vld [vmem:[#allocation2 + $0x4e8] sm:$0xff]
        %v429 = vld [vmem:[#allocation2 + $0x4f0] sm:$0xff]
        %v430 = vld [vmem:[#allocation2 + $0x4f8] sm:$0xff]
        %v431 = vld [vmem:[#allocation2 + $0x500] sm:$0xff]
        %v432 = vld [vmem:[#allocation2 + $0x508] sm:$0xff]
        %v433 = vld [vmem:[#allocation2 + $0x510] sm:$0xff]
        %v434 = vld [vmem:[#allocation2 + $0x518] sm:$0xff]
        %v435 = vld [vmem:[#allocation2 + $0x520] sm:$0xff]
        %v436 = vld [vmem:[#allocation2 + $0x528] sm:$0xff]
        %v437 = vld [vmem:[#allocation2 + $0x530] sm:$0xff]
        %v438 = vld [vmem:[#allocation2 + $0x538] sm:$0xff]
        %v439 = vld [vmem:[#allocation2 + $0x540] sm:$0xff]
        %v440 = vld [vmem:[#allocation2 + $0x548] sm:$0xff]
        %v441 = vld [vmem:[#allocation2 + $0x550] sm:$0xff]
        %v442 = vld [vmem:[#allocation2 + $0x558] sm:$0xff]
        %v443 = vld [vmem:[#allocation2 + $0x560] sm:$0xff]
        %v444 = vld [vmem:[#allocation2 + $0x568] sm:$0xff]
        %v445 = vld [vmem:[#allocation2 + $0x570] sm:$0xff]
        %v446 = vld [vmem:[#allocation2 + $0x578] sm:$0xff]
        %v447 = vld [vmem:[#allocation2 + $0x580] sm:$0xff]
        %v448 = vld [vmem:[#allocation2 + $0x588] sm:$0xff]
        %v449 = vld [vmem:[#allocation2 + $0x590] sm:$0xff]
        %v450 = vld [vmem:[#allocation2 + $0x598] sm:$0xff]
        %v451 = vld [vmem:[#allocation2 + $0x5a0] sm:$0xff]
        %v452 = vld [vmem:[#allocation2 + $0x5a8] sm:$0xff]
        %v453 = vld [vmem:[#allocation2 + $0x5b0] sm:$0xff]
        %v454 = vld [vmem:[#allocation2 + $0x5b8] sm:$0xff]
        %v455 = vld [vmem:[#allocation2 + $0x5c0] sm:$0xff]
        %v456 = vld [vmem:[#allocation2 + $0x5c8] sm:$0xff]
        %v457 = vld [vmem:[#allocation2 + $0x5d0] sm:$0xff]
        %v458 = vld [vmem:[#allocation2 + $0x5d8] sm:$0xff]
        %v459 = vld [vmem:[#allocation2 + $0x5e0] sm:$0xff]
        %v460 = vld [vmem:[#allocation2 + $0x5e8] sm:$0xff]
        %v461 = vld [vmem:[#allocation2 + $0x5f0] sm:$0xff]
        %v462 = vld [vmem:[#allocation2 + $0x5f8] sm:$0xff]
        %v463 = vld [vmem:[%s2] sm:$0x3f]
        %v465 = vperm.slane %v463, 0
        %v466 = vperm.slane %v463, 1
        %v467 = vperm.slane %v463, 2
        %v468 = vperm.slane %v463, 3
        %v469 = vperm.slane %v463, 4
        %v470 = vperm.slane %v463, 5
        %v481 = vunpack.c.l.b16 %v267
        %v482 = vunpack.c.h.b16 %v267
        %v483 = vunpack.c.l.b16 %v268
        %v484 = vunpack.c.h.b16 %v268
        %v485 = vunpack.c.l.b16 %v269
        %v486 = vunpack.c.h.b16 %v269
        %v487 = vunpack.c.l.b16 %v270
        %v488 = vunpack.c.h.b16 %v270
        %v489 = vpack.c.b16 %v485, %v481
        %v490 = vpack.c.b16 %v486, %v482
        %v491 = vpack.c.b16 %v487, %v483
        %v492 = vpack.c.b16 %v488, %v484
        %v689 = vunpack.c.l.b16 %v271
        %v690 = vunpack.c.h.b16 %v271
        %v691 = vunpack.c.l.b16 %v272
        %v692 = vunpack.c.h.b16 %v272
        %v693 = vunpack.c.l.b16 %v273
        %v694 = vunpack.c.h.b16 %v273
        %v695 = vunpack.c.l.b16 %v274
        %v696 = vunpack.c.h.b16 %v274
        %v697 = vunpack.c.l.b16 %v275
        %v698 = vunpack.c.h.b16 %v275
        %v699 = vunpack.c.l.b16 %v276
        %v700 = vunpack.c.h.b16 %v276
        %v701 = vunpack.c.l.b16 %v277
        %v702 = vunpack.c.h.b16 %v277
        %v703 = vunpack.c.l.b16 %v278
        %v704 = vunpack.c.h.b16 %v278
        %v705 = vunpack.c.l.b16 %v279
        %v706 = vunpack.c.h.b16 %v279
        %v707 = vunpack.c.l.b16 %v280
        %v708 = vunpack.c.h.b16 %v280
        %v709 = vunpack.c.l.b16 %v281
        %v710 = vunpack.c.h.b16 %v281
        %v711 = vunpack.c.l.b16 %v282
        %v712 = vunpack.c.h.b16 %v282
        %v713 = vunpack.c.l.b16 %v283
        %v714 = vunpack.c.h.b16 %v283
        %v715 = vunpack.c.l.b16 %v284
        %v716 = vunpack.c.h.b16 %v284
        %v717 = vunpack.c.l.b16 %v285
        %v718 = vunpack.c.h.b16 %v285
        %v719 = vunpack.c.l.b16 %v286
        %v720 = vunpack.c.h.b16 %v286
        %v721 = vunpack.c.l.b16 %v287
        %v722 = vunpack.c.h.b16 %v287
        %v723 = vunpack.c.l.b16 %v288
        %v724 = vunpack.c.h.b16 %v288
        %v725 = vunpack.c.l.b16 %v289
        %v726 = vunpack.c.h.b16 %v289
        %v727 = vunpack.c.l.b16 %v290
        %v728 = vunpack.c.h.b16 %v290
        %v729 = vunpack.c.l.b16 %v291
        %v730 = vunpack.c.h.b16 %v291
        %v731 = vunpack.c.l.b16 %v292
        %v732 = vunpack.c.h.b16 %v292
        %v733 = vunpack.c.l.b16 %v293
        %v734 = vunpack.c.h.b16 %v293
        %v735 = vunpack.c.l.b16 %v294
        %v736 = vunpack.c.h.b16 %v294
        %v737 = vunpack.c.l.b16 %v295
        %v738 = vunpack.c.h.b16 %v295
        %v739 = vunpack.c.l.b16 %v296
        %v740 = vunpack.c.h.b16 %v296
        %v741 = vunpack.c.l.b16 %v297
        %v742 = vunpack.c.h.b16 %v297
        %v743 = vunpack.c.l.b16 %v298
        %v744 = vunpack.c.h.b16 %v298
        %v745 = vunpack.c.l.b16 %v299
        %v746 = vunpack.c.h.b16 %v299
        %v747 = vunpack.c.l.b16 %v300
        %v748 = vunpack.c.h.b16 %v300
        %v749 = vunpack.c.l.b16 %v301
        %v750 = vunpack.c.h.b16 %v301
        %v751 = vunpack.c.l.b16 %v302
        %v752 = vunpack.c.h.b16 %v302
        %v753 = vunpack.c.l.b16 %v303
        %v754 = vunpack.c.h.b16 %v303
        %v755 = vunpack.c.l.b16 %v304
        %v756 = vunpack.c.h.b16 %v304
        %v757 = vunpack.c.l.b16 %v305
        %v758 = vunpack.c.h.b16 %v305
        %v759 = vunpack.c.l.b16 %v306
        %v760 = vunpack.c.h.b16 %v306
        %v761 = vunpack.c.l.b16 %v307
        %v762 = vunpack.c.h.b16 %v307
        %v763 = vunpack.c.l.b16 %v308
        %v764 = vunpack.c.h.b16 %v308
        %v765 = vunpack.c.l.b16 %v309
        %v766 = vunpack.c.h.b16 %v309
        %v767 = vunpack.c.l.b16 %v310
        %v768 = vunpack.c.h.b16 %v310
        %v769 = vunpack.c.l.b16 %v311
        %v770 = vunpack.c.h.b16 %v311
        %v771 = vunpack.c.l.b16 %v312
        %v772 = vunpack.c.h.b16 %v312
        %v773 = vunpack.c.l.b16 %v313
        %v774 = vunpack.c.h.b16 %v313
        %v775 = vunpack.c.l.b16 %v314
        %v776 = vunpack.c.h.b16 %v314
        %v777 = vunpack.c.l.b16 %v315
        %v778 = vunpack.c.h.b16 %v315
        %v779 = vunpack.c.l.b16 %v316
        %v780 = vunpack.c.h.b16 %v316
        %v781 = vunpack.c.l.b16 %v317
        %v782 = vunpack.c.h.b16 %v317
        %v783 = vunpack.c.l.b16 %v318
        %v784 = vunpack.c.h.b16 %v318
        %v785 = vunpack.c.l.b16 %v319
        %v786 = vunpack.c.h.b16 %v319
        %v787 = vunpack.c.l.b16 %v320
        %v788 = vunpack.c.h.b16 %v320
        %v789 = vunpack.c.l.b16 %v321
        %v790 = vunpack.c.h.b16 %v321
        %v791 = vunpack.c.l.b16 %v322
        %v792 = vunpack.c.h.b16 %v322
        %v793 = vunpack.c.l.b16 %v323
        %v794 = vunpack.c.h.b16 %v323
        %v795 = vunpack.c.l.b16 %v324
        %v796 = vunpack.c.h.b16 %v324
        %v797 = vunpack.c.l.b16 %v325
        %v798 = vunpack.c.h.b16 %v325
        %v799 = vunpack.c.l.b16 %v326
        %v800 = vunpack.c.h.b16 %v326
        %v801 = vunpack.c.l.b16 %v327
        %v802 = vunpack.c.h.b16 %v327
        %v803 = vunpack.c.l.b16 %v328
        %v804 = vunpack.c.h.b16 %v328
        %v805 = vunpack.c.l.b16 %v329
        %v806 = vunpack.c.h.b16 %v329
        %v807 = vunpack.c.l.b16 %v330
        %v808 = vunpack.c.h.b16 %v330
        %v809 = vunpack.c.l.b16 %v331
        %v810 = vunpack.c.h.b16 %v331
        %v811 = vunpack.c.l.b16 %v332
        %v812 = vunpack.c.h.b16 %v332
        %v813 = vunpack.c.l.b16 %v333
        %v814 = vunpack.c.h.b16 %v333
        %v815 = vunpack.c.l.b16 %v334
        %v816 = vunpack.c.h.b16 %v334
        %v817 = vunpack.c.l.b16 %v335
        %v818 = vunpack.c.h.b16 %v335
        %v819 = vunpack.c.l.b16 %v336
        %v820 = vunpack.c.h.b16 %v336
        %v821 = vunpack.c.l.b16 %v337
        %v822 = vunpack.c.h.b16 %v337
        %v823 = vunpack.c.l.b16 %v338
        %v824 = vunpack.c.h.b16 %v338
        %v825 = vunpack.c.l.b16 %v339
        %v826 = vunpack.c.h.b16 %v339
        %v827 = vunpack.c.l.b16 %v340
        %v828 = vunpack.c.h.b16 %v340
        %v829 = vunpack.c.l.b16 %v341
        %v830 = vunpack.c.h.b16 %v341
        %v831 = vunpack.c.l.b16 %v342
        %v832 = vunpack.c.h.b16 %v342
        %v833 = vunpack.c.l.b16 %v343
        %v834 = vunpack.c.h.b16 %v343
        %v835 = vunpack.c.l.b16 %v344
        %v836 = vunpack.c.h.b16 %v344
        %v837 = vunpack.c.l.b16 %v345
        %v838 = vunpack.c.h.b16 %v345
        %v839 = vunpack.c.l.b16 %v346
        %v840 = vunpack.c.h.b16 %v346
        %v841 = vunpack.c.l.b16 %v347
        %v842 = vunpack.c.h.b16 %v347
        %v843 = vunpack.c.l.b16 %v348
        %v844 = vunpack.c.h.b16 %v348
        %v845 = vunpack.c.l.b16 %v349
        %v846 = vunpack.c.h.b16 %v349
        %v847 = vunpack.c.l.b16 %v350
        %v848 = vunpack.c.h.b16 %v350
        %v849 = vunpack.c.l.b16 %v351
        %v850 = vunpack.c.h.b16 %v351
        %v851 = vunpack.c.l.b16 %v352
        %v852 = vunpack.c.h.b16 %v352
        %v853 = vunpack.c.l.b16 %v353
        %v854 = vunpack.c.h.b16 %v353
        %v855 = vunpack.c.l.b16 %v354
        %v856 = vunpack.c.h.b16 %v354
        %v857 = vunpack.c.l.b16 %v355
        %v858 = vunpack.c.h.b16 %v355
        %v859 = vunpack.c.l.b16 %v356
        %v860 = vunpack.c.h.b16 %v356
        %v861 = vunpack.c.l.b16 %v357
        %v862 = vunpack.c.h.b16 %v357
        %v863 = vunpack.c.l.b16 %v358
        %v864 = vunpack.c.h.b16 %v358
        %v865 = vunpack.c.l.b16 %v359
        %v866 = vunpack.c.h.b16 %v359
        %v867 = vunpack.c.l.b16 %v360
        %v868 = vunpack.c.h.b16 %v360
        %v869 = vunpack.c.l.b16 %v361
        %v870 = vunpack.c.h.b16 %v361
        %v871 = vunpack.c.l.b16 %v362
        %v872 = vunpack.c.h.b16 %v362
        %v873 = vunpack.c.l.b16 %v363
        %v874 = vunpack.c.h.b16 %v363
        %v875 = vunpack.c.l.b16 %v364
        %v876 = vunpack.c.h.b16 %v364
        %v877 = vunpack.c.l.b16 %v365
        %v878 = vunpack.c.h.b16 %v365
        %v879 = vunpack.c.l.b16 %v366
        %v880 = vunpack.c.h.b16 %v366
        %v881 = vunpack.c.l.b16 %v367
        %v882 = vunpack.c.h.b16 %v367
        %v883 = vunpack.c.l.b16 %v368
        %v884 = vunpack.c.h.b16 %v368
        %v885 = vunpack.c.l.b16 %v369
        %v886 = vunpack.c.h.b16 %v369
        %v887 = vunpack.c.l.b16 %v370
        %v888 = vunpack.c.h.b16 %v370
        %v889 = vunpack.c.l.b16 %v371
        %v890 = vunpack.c.h.b16 %v371
        %v891 = vunpack.c.l.b16 %v372
        %v892 = vunpack.c.h.b16 %v372
        %v893 = vunpack.c.l.b16 %v373
        %v894 = vunpack.c.h.b16 %v373
        %v895 = vunpack.c.l.b16 %v374
        %v896 = vunpack.c.h.b16 %v374
        %v897 = vunpack.c.l.b16 %v375
        %v898 = vunpack.c.h.b16 %v375
        %v899 = vunpack.c.l.b16 %v376
        %v900 = vunpack.c.h.b16 %v376
        %v901 = vunpack.c.l.b16 %v377
        %v902 = vunpack.c.h.b16 %v377
        %v903 = vunpack.c.l.b16 %v378
        %v904 = vunpack.c.h.b16 %v378
        %v905 = vunpack.c.l.b16 %v379
        %v906 = vunpack.c.h.b16 %v379
        %v907 = vunpack.c.l.b16 %v380
        %v908 = vunpack.c.h.b16 %v380
        %v909 = vunpack.c.l.b16 %v381
        %v910 = vunpack.c.h.b16 %v381
        %v911 = vunpack.c.l.b16 %v382
        %v912 = vunpack.c.h.b16 %v382
        %v913 = vunpack.c.l.b16 %v383
        %v914 = vunpack.c.h.b16 %v383
        %v915 = vunpack.c.l.b16 %v384
        %v916 = vunpack.c.h.b16 %v384
        %v917 = vunpack.c.l.b16 %v385
        %v918 = vunpack.c.h.b16 %v385
        %v919 = vunpack.c.l.b16 %v386
        %v920 = vunpack.c.h.b16 %v386
        %v921 = vunpack.c.l.b16 %v387
        %v922 = vunpack.c.h.b16 %v387
        %v923 = vunpack.c.l.b16 %v388
        %v924 = vunpack.c.h.b16 %v388
        %v925 = vunpack.c.l.b16 %v389
        %v926 = vunpack.c.h.b16 %v389
        %v927 = vunpack.c.l.b16 %v390
        %v928 = vunpack.c.h.b16 %v390
        %v929 = vunpack.c.l.b16 %v391
        %v930 = vunpack.c.h.b16 %v391
        %v931 = vunpack.c.l.b16 %v392
        %v932 = vunpack.c.h.b16 %v392
        %v933 = vunpack.c.l.b16 %v393
        %v934 = vunpack.c.h.b16 %v393
        %v935 = vunpack.c.l.b16 %v394
        %v936 = vunpack.c.h.b16 %v394
        %v937 = vunpack.c.l.b16 %v395
        %v938 = vunpack.c.h.b16 %v395
        %v939 = vunpack.c.l.b16 %v396
        %v940 = vunpack.c.h.b16 %v396
        %v941 = vunpack.c.l.b16 %v397
        %v942 = vunpack.c.h.b16 %v397
        %v943 = vunpack.c.l.b16 %v398
        %v944 = vunpack.c.h.b16 %v398
        %v945 = vunpack.c.l.b16 %v399
        %v946 = vunpack.c.h.b16 %v399
        %v947 = vunpack.c.l.b16 %v400
        %v948 = vunpack.c.h.b16 %v400
        %v949 = vunpack.c.l.b16 %v401
        %v950 = vunpack.c.h.b16 %v401
        %v951 = vunpack.c.l.b16 %v402
        %v952 = vunpack.c.h.b16 %v402
        %v953 = vunpack.c.l.b16 %v403
        %v954 = vunpack.c.h.b16 %v403
        %v955 = vunpack.c.l.b16 %v404
        %v956 = vunpack.c.h.b16 %v404
        %v957 = vunpack.c.l.b16 %v405
        %v958 = vunpack.c.h.b16 %v405
        %v959 = vunpack.c.l.b16 %v406
        %v960 = vunpack.c.h.b16 %v406
        %v961 = vunpack.c.l.b16 %v407
        %v962 = vunpack.c.h.b16 %v407
        %v963 = vunpack.c.l.b16 %v408
        %v964 = vunpack.c.h.b16 %v408
        %v965 = vunpack.c.l.b16 %v409
        %v966 = vunpack.c.h.b16 %v409
        %v967 = vunpack.c.l.b16 %v410
        %v968 = vunpack.c.h.b16 %v410
        %v969 = vunpack.c.l.b16 %v411
        %v970 = vunpack.c.h.b16 %v411
        %v971 = vunpack.c.l.b16 %v412
        %v972 = vunpack.c.h.b16 %v412
        %v973 = vunpack.c.l.b16 %v413
        %v974 = vunpack.c.h.b16 %v413
        %v975 = vunpack.c.l.b16 %v414
        %v976 = vunpack.c.h.b16 %v414
        %v977 = vunpack.c.l.b16 %v415
        %v978 = vunpack.c.h.b16 %v415
        %v979 = vunpack.c.l.b16 %v416
        %v980 = vunpack.c.h.b16 %v416
        %v981 = vunpack.c.l.b16 %v417
        %v982 = vunpack.c.h.b16 %v417
        %v983 = vunpack.c.l.b16 %v418
        %v984 = vunpack.c.h.b16 %v418
        %v985 = vunpack.c.l.b16 %v419
        %v986 = vunpack.c.h.b16 %v419
        %v987 = vunpack.c.l.b16 %v420
        %v988 = vunpack.c.h.b16 %v420
        %v989 = vunpack.c.l.b16 %v421
        %v990 = vunpack.c.h.b16 %v421
        %v991 = vunpack.c.l.b16 %v422
        %v992 = vunpack.c.h.b16 %v422
        %v993 = vunpack.c.l.b16 %v423
        %v994 = vunpack.c.h.b16 %v423
        %v995 = vunpack.c.l.b16 %v424
        %v996 = vunpack.c.h.b16 %v424
        %v997 = vunpack.c.l.b16 %v425
        %v998 = vunpack.c.h.b16 %v425
        %v999 = vunpack.c.l.b16 %v426
        %v1000 = vunpack.c.h.b16 %v426
        %v1001 = vunpack.c.l.b16 %v427
        %v1002 = vunpack.c.h.b16 %v427
        %v1003 = vunpack.c.l.b16 %v428
        %v1004 = vunpack.c.h.b16 %v428
        %v1005 = vunpack.c.l.b16 %v429
        %v1006 = vunpack.c.h.b16 %v429
        %v1007 = vunpack.c.l.b16 %v430
        %v1008 = vunpack.c.h.b16 %v430
        %v1009 = vunpack.c.l.b16 %v431
        %v1010 = vunpack.c.h.b16 %v431
        %v1011 = vunpack.c.l.b16 %v432
        %v1012 = vunpack.c.h.b16 %v432
        %v1013 = vunpack.c.l.b16 %v433
        %v1014 = vunpack.c.h.b16 %v433
        %v1015 = vunpack.c.l.b16 %v434
        %v1016 = vunpack.c.h.b16 %v434
        %v1017 = vunpack.c.l.b16 %v435
        %v1018 = vunpack.c.h.b16 %v435
        %v1019 = vunpack.c.l.b16 %v436
        %v1020 = vunpack.c.h.b16 %v436
        %v1021 = vunpack.c.l.b16 %v437
        %v1022 = vunpack.c.h.b16 %v437
        %v1023 = vunpack.c.l.b16 %v438
        %v1024 = vunpack.c.h.b16 %v438
        %v1025 = vunpack.c.l.b16 %v439
        %v1026 = vunpack.c.h.b16 %v439
        %v1027 = vunpack.c.l.b16 %v440
        %v1028 = vunpack.c.h.b16 %v440
        %v1029 = vunpack.c.l.b16 %v441
        %v1030 = vunpack.c.h.b16 %v441
        %v1031 = vunpack.c.l.b16 %v442
        %v1032 = vunpack.c.h.b16 %v442
        %v1033 = vunpack.c.l.b16 %v443
        %v1034 = vunpack.c.h.b16 %v443
        %v1035 = vunpack.c.l.b16 %v444
        %v1036 = vunpack.c.h.b16 %v444
        %v1037 = vunpack.c.l.b16 %v445
        %v1038 = vunpack.c.h.b16 %v445
        %v1039 = vunpack.c.l.b16 %v446
        %v1040 = vunpack.c.h.b16 %v446
        %v1041 = vunpack.c.l.b16 %v447
        %v1042 = vunpack.c.h.b16 %v447
        %v1043 = vunpack.c.l.b16 %v448
        %v1044 = vunpack.c.h.b16 %v448
        %v1045 = vunpack.c.l.b16 %v449
        %v1046 = vunpack.c.h.b16 %v449
        %v1047 = vunpack.c.l.b16 %v450
        %v1048 = vunpack.c.h.b16 %v450
        %v1049 = vunpack.c.l.b16 %v451
        %v1050 = vunpack.c.h.b16 %v451
        %v1051 = vunpack.c.l.b16 %v452
        %v1052 = vunpack.c.h.b16 %v452
        %v1053 = vunpack.c.l.b16 %v453
        %v1054 = vunpack.c.h.b16 %v453
        %v1055 = vunpack.c.l.b16 %v454
        %v1056 = vunpack.c.h.b16 %v454
        %v1057 = vunpack.c.l.b16 %v455
        %v1058 = vunpack.c.h.b16 %v455
        %v1059 = vunpack.c.l.b16 %v456
        %v1060 = vunpack.c.h.b16 %v456
        %v1061 = vunpack.c.l.b16 %v457
        %v1062 = vunpack.c.h.b16 %v457
        %v1063 = vunpack.c.l.b16 %v458
        %v1064 = vunpack.c.h.b16 %v458
        %v1065 = vunpack.c.l.b16 %v459
        %v1066 = vunpack.c.h.b16 %v459
        %v1067 = vunpack.c.l.b16 %v460
        %v1068 = vunpack.c.h.b16 %v460
        %v1069 = vunpack.c.l.b16 %v461
        %v1070 = vunpack.c.h.b16 %v461
        %v1071 = vunpack.c.l.b16 %v462
        %v1072 = vunpack.c.h.b16 %v462
        %v1073 = vpack.c.b16 %v695, %v689
        %v1074 = vpack.c.b16 %v696, %v690
        %v1075 = vpack.c.b16 %v697, %v691
        %v1076 = vpack.c.b16 %v698, %v692
        %v1077 = vpack.c.b16 %v699, %v693
        %v1078 = vpack.c.b16 %v700, %v694
        %v1079 = vpack.c.b16 %v707, %v701
        %v1080 = vpack.c.b16 %v708, %v702
        %v1081 = vpack.c.b16 %v709, %v703
        %v1082 = vpack.c.b16 %v710, %v704
        %v1083 = vpack.c.b16 %v711, %v705
        %v1084 = vpack.c.b16 %v712, %v706
        %v1085 = vpack.c.b16 %v719, %v713
        %v1086 = vpack.c.b16 %v720, %v714
        %v1087 = vpack.c.b16 %v721, %v715
        %v1088 = vpack.c.b16 %v722, %v716
        %v1089 = vpack.c.b16 %v723, %v717
        %v1090 = vpack.c.b16 %v724, %v718
        %v1091 = vpack.c.b16 %v731, %v725
        %v1092 = vpack.c.b16 %v732, %v726
        %v1093 = vpack.c.b16 %v733, %v727
        %v1094 = vpack.c.b16 %v734, %v728
        %v1095 = vpack.c.b16 %v735, %v729
        %v1096 = vpack.c.b16 %v736, %v730
        %v1097 = vpack.c.b16 %v743, %v737
        %v1098 = vpack.c.b16 %v744, %v738
        %v1099 = vpack.c.b16 %v745, %v739
        %v1100 = vpack.c.b16 %v746, %v740
        %v1101 = vpack.c.b16 %v747, %v741
        %v1102 = vpack.c.b16 %v748, %v742
        %v1103 = vpack.c.b16 %v755, %v749
        %v1104 = vpack.c.b16 %v756, %v750
        %v1105 = vpack.c.b16 %v757, %v751
        %v1106 = vpack.c.b16 %v758, %v752
        %v1107 = vpack.c.b16 %v759, %v753
        %v1108 = vpack.c.b16 %v760, %v754
        %v1109 = vpack.c.b16 %v767, %v761
        %v1110 = vpack.c.b16 %v768, %v762
        %v1111 = vpack.c.b16 %v769, %v763
        %v1112 = vpack.c.b16 %v770, %v764
        %v1113 = vpack.c.b16 %v771, %v765
        %v1114 = vpack.c.b16 %v772, %v766
        %v1115 = vpack.c.b16 %v779, %v773
        %v1116 = vpack.c.b16 %v780, %v774
        %v1117 = vpack.c.b16 %v781, %v775
        %v1118 = vpack.c.b16 %v782, %v776
        %v1119 = vpack.c.b16 %v783, %v777
        %v1120 = vpack.c.b16 %v784, %v778
        %v1121 = vpack.c.b16 %v791, %v785
        %v1122 = vpack.c.b16 %v792, %v786
        %v1123 = vpack.c.b16 %v793, %v787
        %v1124 = vpack.c.b16 %v794, %v788
        %v1125 = vpack.c.b16 %v795, %v789
        %v1126 = vpack.c.b16 %v796, %v790
        %v1127 = vpack.c.b16 %v803, %v797
        %v1128 = vpack.c.b16 %v804, %v798
        %v1129 = vpack.c.b16 %v805, %v799
        %v1130 = vpack.c.b16 %v806, %v800
        %v1131 = vpack.c.b16 %v807, %v801
        %v1132 = vpack.c.b16 %v808, %v802
        %v1133 = vpack.c.b16 %v815, %v809
        %v1134 = vpack.c.b16 %v816, %v810
        %v1135 = vpack.c.b16 %v817, %v811
        %v1136 = vpack.c.b16 %v818, %v812
        %v1137 = vpack.c.b16 %v819, %v813
        %v1138 = vpack.c.b16 %v820, %v814
        %v1139 = vpack.c.b16 %v827, %v821
        %v1140 = vpack.c.b16 %v828, %v822
        %v1141 = vpack.c.b16 %v829, %v823
        %v1142 = vpack.c.b16 %v830, %v824
        %v1143 = vpack.c.b16 %v831, %v825
        %v1144 = vpack.c.b16 %v832, %v826
        %v1145 = vpack.c.b16 %v839, %v833
        %v1146 = vpack.c.b16 %v840, %v834
        %v1147 = vpack.c.b16 %v841, %v835
        %v1148 = vpack.c.b16 %v842, %v836
        %v1149 = vpack.c.b16 %v843, %v837
        %v1150 = vpack.c.b16 %v844, %v838
        %v1151 = vpack.c.b16 %v851, %v845
        %v1152 = vpack.c.b16 %v852, %v846
        %v1153 = vpack.c.b16 %v853, %v847
        %v1154 = vpack.c.b16 %v854, %v848
        %v1155 = vpack.c.b16 %v855, %v849
        %v1156 = vpack.c.b16 %v856, %v850
        %v1157 = vpack.c.b16 %v863, %v857
        %v1158 = vpack.c.b16 %v864, %v858
        %v1159 = vpack.c.b16 %v865, %v859
        %v1160 = vpack.c.b16 %v866, %v860
        %v1161 = vpack.c.b16 %v867, %v861
        %v1162 = vpack.c.b16 %v868, %v862
        %v1163 = vpack.c.b16 %v875, %v869
        %v1164 = vpack.c.b16 %v876, %v870
        %v1165 = vpack.c.b16 %v877, %v871
        %v1166 = vpack.c.b16 %v878, %v872
        %v1167 = vpack.c.b16 %v879, %v873
        %v1168 = vpack.c.b16 %v880, %v874
        %v1169 = vpack.c.b16 %v887, %v881
        %v1170 = vpack.c.b16 %v888, %v882
        %v1171 = vpack.c.b16 %v889, %v883
        %v1172 = vpack.c.b16 %v890, %v884
        %v1173 = vpack.c.b16 %v891, %v885
        %v1174 = vpack.c.b16 %v892, %v886
        %v1175 = vpack.c.b16 %v899, %v893
        %v1176 = vpack.c.b16 %v900, %v894
        %v1177 = vpack.c.b16 %v901, %v895
        %v1178 = vpack.c.b16 %v902, %v896
        %v1179 = vpack.c.b16 %v903, %v897
        %v1180 = vpack.c.b16 %v904, %v898
        %v1181 = vpack.c.b16 %v911, %v905
        %v1182 = vpack.c.b16 %v912, %v906
        %v1183 = vpack.c.b16 %v913, %v907
        %v1184 = vpack.c.b16 %v914, %v908
        %v1185 = vpack.c.b16 %v915, %v909
        %v1186 = vpack.c.b16 %v916, %v910
        %v1187 = vpack.c.b16 %v923, %v917
        %v1188 = vpack.c.b16 %v924, %v918
        %v1189 = vpack.c.b16 %v925, %v919
        %v1190 = vpack.c.b16 %v926, %v920
        %v1191 = vpack.c.b16 %v927, %v921
        %v1192 = vpack.c.b16 %v928, %v922
        %v1193 = vpack.c.b16 %v935, %v929
        %v1194 = vpack.c.b16 %v936, %v930
        %v1195 = vpack.c.b16 %v937, %v931
        %v1196 = vpack.c.b16 %v938, %v932
        %v1197 = vpack.c.b16 %v939, %v933
        %v1198 = vpack.c.b16 %v940, %v934
        %v1199 = vpack.c.b16 %v947, %v941
        %v1200 = vpack.c.b16 %v948, %v942
        %v1201 = vpack.c.b16 %v949, %v943
        %v1202 = vpack.c.b16 %v950, %v944
        %v1203 = vpack.c.b16 %v951, %v945
        %v1204 = vpack.c.b16 %v952, %v946
        %v1205 = vpack.c.b16 %v959, %v953
        %v1206 = vpack.c.b16 %v960, %v954
        %v1207 = vpack.c.b16 %v961, %v955
        %v1208 = vpack.c.b16 %v962, %v956
        %v1209 = vpack.c.b16 %v963, %v957
        %v1210 = vpack.c.b16 %v964, %v958
        %v1211 = vpack.c.b16 %v971, %v965
        %v1212 = vpack.c.b16 %v972, %v966
        %v1213 = vpack.c.b16 %v973, %v967
        %v1214 = vpack.c.b16 %v974, %v968
        %v1215 = vpack.c.b16 %v975, %v969
        %v1216 = vpack.c.b16 %v976, %v970
        %v1217 = vpack.c.b16 %v983, %v977
        %v1218 = vpack.c.b16 %v984, %v978
        %v1219 = vpack.c.b16 %v985, %v979
        %v1220 = vpack.c.b16 %v986, %v980
        %v1221 = vpack.c.b16 %v987, %v981
        %v1222 = vpack.c.b16 %v988, %v982
        %v1223 = vpack.c.b16 %v995, %v989
        %v1224 = vpack.c.b16 %v996, %v990
        %v1225 = vpack.c.b16 %v997, %v991
        %v1226 = vpack.c.b16 %v998, %v992
        %v1227 = vpack.c.b16 %v999, %v993
        %v1228 = vpack.c.b16 %v1000, %v994
        %v1229 = vpack.c.b16 %v1007, %v1001
        %v1230 = vpack.c.b16 %v1008, %v1002
        %v1231 = vpack.c.b16 %v1009, %v1003
        %v1232 = vpack.c.b16 %v1010, %v1004
        %v1233 = vpack.c.b16 %v1011, %v1005
        %v1234 = vpack.c.b16 %v1012, %v1006
        %v1235 = vpack.c.b16 %v1019, %v1013
        %v1236 = vpack.c.b16 %v1020, %v1014
        %v1237 = vpack.c.b16 %v1021, %v1015
        %v1238 = vpack.c.b16 %v1022, %v1016
        %v1239 = vpack.c.b16 %v1023, %v1017
        %v1240 = vpack.c.b16 %v1024, %v1018
        %v1241 = vpack.c.b16 %v1031, %v1025
        %v1242 = vpack.c.b16 %v1032, %v1026
        %v1243 = vpack.c.b16 %v1033, %v1027
        %v1244 = vpack.c.b16 %v1034, %v1028
        %v1245 = vpack.c.b16 %v1035, %v1029
        %v1246 = vpack.c.b16 %v1036, %v1030
        %v1247 = vpack.c.b16 %v1043, %v1037
        %v1248 = vpack.c.b16 %v1044, %v1038
        %v1249 = vpack.c.b16 %v1045, %v1039
        %v1250 = vpack.c.b16 %v1046, %v1040
        %v1251 = vpack.c.b16 %v1047, %v1041
        %v1252 = vpack.c.b16 %v1048, %v1042
        %v1253 = vpack.c.b16 %v1055, %v1049
        %v1254 = vpack.c.b16 %v1056, %v1050
        %v1255 = vpack.c.b16 %v1057, %v1051
        %v1256 = vpack.c.b16 %v1058, %v1052
        %v1257 = vpack.c.b16 %v1059, %v1053
        %v1258 = vpack.c.b16 %v1060, %v1054
        %v1259 = vpack.c.b16 %v1067, %v1061
        %v1260 = vpack.c.b16 %v1068, %v1062
        %v1261 = vpack.c.b16 %v1069, %v1063
        %v1262 = vpack.c.b16 %v1070, %v1064
        %v1263 = vpack.c.b16 %v1071, %v1065
        %v1264 = vpack.c.b16 %v1072, %v1066
        %1457 = vmatpush.bf16.msra.mxu0 %v1115
        %1458 = vmatpush.bf16.msra.mxu0 %v1109
        %1459 = vmatpush.bf16.msra.mxu0 %v1103
        %1460 = vmatpush.bf16.msra.mxu0 %v1097
        %1461 = vmatpush.bf16.msra.mxu0 %v1091
        %1462 = vmatpush.bf16.msra.mxu0 %v1085
        %1463 = vmatpush.bf16.msra.mxu0 %v1079
        %1464 = vmatpush.bf16.msra.mxu0 %v1073
        %1465 = vmatmul.bf16.gmra.mxu0 %v489
        %v1466 = vpop.f32.mrf.mxu0
        %v1467 = vadd.f32 %v465, %v1466
        %v1468 = vpop.f32.mrf.mxu0
        %v1469 = vadd.f32 %v465, %v1468
        %1470 = vdwg.mxu0
        %1471 = vmatpush.bf16.msra.mxu0 %v1163
        %1472 = vmatpush.bf16.msra.mxu0 %v1157
        %1473 = vmatpush.bf16.msra.mxu0 %v1151
        %1474 = vmatpush.bf16.msra.mxu0 %v1145
        %1475 = vmatpush.bf16.msra.mxu0 %v1139
        %1476 = vmatpush.bf16.msra.mxu0 %v1133
        %1477 = vmatpush.bf16.msra.mxu0 %v1127
        %1478 = vmatpush.bf16.msra.mxu0 %v1121
        %1479 = vmatmul.bf16.gmra.mxu0 %v490
        %v1480 = vpop.f32.mrf.mxu0
        %v1481 = vadd.f32 %v1467, %v1480
        %v1482 = vpop.f32.mrf.mxu0
        %v1483 = vadd.f32 %v1469, %v1482
        %1484 = vdwg.mxu0
        %1485 = vmatpush.bf16.msra.mxu0 %v1211
        %1486 = vmatpush.bf16.msra.mxu0 %v1205
        %1487 = vmatpush.bf16.msra.mxu0 %v1199
        %1488 = vmatpush.bf16.msra.mxu0 %v1193
        %1489 = vmatpush.bf16.msra.mxu0 %v1187
        %1490 = vmatpush.bf16.msra.mxu0 %v1181
        %1491 = vmatpush.bf16.msra.mxu0 %v1175
        %1492 = vmatpush.bf16.msra.mxu0 %v1169
        %1493 = vmatmul.bf16.gmra.mxu0 %v491
        %v1494 = vpop.f32.mrf.mxu0
        %v1495 = vadd.f32 %v1481, %v1494
        %v1496 = vpop.f32.mrf.mxu0
        %v1497 = vadd.f32 %v1483, %v1496
        %1498 = vdwg.mxu0
        %1499 = vmatpush.bf16.msra.mxu0 %v1259
        %1500 = vmatpush.bf16.msra.mxu0 %v1253
        %1501 = vmatpush.bf16.msra.mxu0 %v1247
        %1502 = vmatpush.bf16.msra.mxu0 %v1241
        %1503 = vmatpush.bf16.msra.mxu0 %v1235
        %1504 = vmatpush.bf16.msra.mxu0 %v1229
        %1505 = vmatpush.bf16.msra.mxu0 %v1223
        %1506 = vmatpush.bf16.msra.mxu0 %v1217
        %1507 = vmatmul.bf16.gmra.mxu0 %v492
        %v1508 = vpop.f32.mrf.mxu0
        %v1509 = vadd.f32 %v1495, %v1508
        %v1510 = vpop.f32.mrf.mxu0
        %v1511 = vadd.f32 %v1497, %v1510
        %1512 = vdwg.mxu0
        %1513 = vmatpush.bf16.msra.mxu0 %v1116
        %1514 = vmatpush.bf16.msra.mxu0 %v1110
        %1515 = vmatpush.bf16.msra.mxu0 %v1104
        %1516 = vmatpush.bf16.msra.mxu0 %v1098
        %1517 = vmatpush.bf16.msra.mxu0 %v1092
        %1518 = vmatpush.bf16.msra.mxu0 %v1086
        %1519 = vmatpush.bf16.msra.mxu0 %v1080
        %1520 = vmatpush.bf16.msra.mxu0 %v1074
        %1521 = vmatmul.bf16.gmra.mxu0 %v489
        %v1522 = vpop.f32.mrf.mxu0
        %v1523 = vadd.f32 %v466, %v1522
        %v1524 = vpop.f32.mrf.mxu0
        %v1525 = vadd.f32 %v466, %v1524
        %1526 = vdwg.mxu0
        %1527 = vmatpush.bf16.msra.mxu0 %v1164
        %1528 = vmatpush.bf16.msra.mxu0 %v1158
        %1529 = vmatpush.bf16.msra.mxu0 %v1152
        %1530 = vmatpush.bf16.msra.mxu0 %v1146
        %1531 = vmatpush.bf16.msra.mxu0 %v1140
        %1532 = vmatpush.bf16.msra.mxu0 %v1134
        %1533 = vmatpush.bf16.msra.mxu0 %v1128
        %1534 = vmatpush.bf16.msra.mxu0 %v1122
        %1535 = vmatmul.bf16.gmra.mxu0 %v490
        %v1536 = vpop.f32.mrf.mxu0
        %v1537 = vadd.f32 %v1523, %v1536
        %v1538 = vpop.f32.mrf.mxu0
        %v1539 = vadd.f32 %v1525, %v1538
        %1540 = vdwg.mxu0
        %1541 = vmatpush.bf16.msra.mxu0 %v1212
        %1542 = vmatpush.bf16.msra.mxu0 %v1206
        %1543 = vmatpush.bf16.msra.mxu0 %v1200
        %1544 = vmatpush.bf16.msra.mxu0 %v1194
        %1545 = vmatpush.bf16.msra.mxu0 %v1188
        %1546 = vmatpush.bf16.msra.mxu0 %v1182
        %1547 = vmatpush.bf16.msra.mxu0 %v1176
        %1548 = vmatpush.bf16.msra.mxu0 %v1170
        %1549 = vmatmul.bf16.gmra.mxu0 %v491
        %v1550 = vpop.f32.mrf.mxu0
        %v1551 = vadd.f32 %v1537, %v1550
        %v1552 = vpop.f32.mrf.mxu0
        %v1553 = vadd.f32 %v1539, %v1552
        %1554 = vdwg.mxu0
        %1555 = vmatpush.bf16.msra.mxu0 %v1260
        %1556 = vmatpush.bf16.msra.mxu0 %v1254
        %1557 = vmatpush.bf16.msra.mxu0 %v1248
        %1558 = vmatpush.bf16.msra.mxu0 %v1242
        %1559 = vmatpush.bf16.msra.mxu0 %v1236
        %1560 = vmatpush.bf16.msra.mxu0 %v1230
        %1561 = vmatpush.bf16.msra.mxu0 %v1224
        %1562 = vmatpush.bf16.msra.mxu0 %v1218
        %1563 = vmatmul.bf16.gmra.mxu0 %v492
        %v1564 = vpop.f32.mrf.mxu0
        %v1565 = vadd.f32 %v1551, %v1564
        %v1566 = vpop.f32.mrf.mxu0
        %v1567 = vadd.f32 %v1553, %v1566
        %1568 = vdwg.mxu0
        %1569 = vmatpush.bf16.msra.mxu0 %v1117
        %1570 = vmatpush.bf16.msra.mxu0 %v1111
        %1571 = vmatpush.bf16.msra.mxu0 %v1105
        %1572 = vmatpush.bf16.msra.mxu0 %v1099
        %1573 = vmatpush.bf16.msra.mxu0 %v1093
        %1574 = vmatpush.bf16.msra.mxu0 %v1087
        %1575 = vmatpush.bf16.msra.mxu0 %v1081
        %1576 = vmatpush.bf16.msra.mxu0 %v1075
        %1577 = vmatmul.bf16.gmra.mxu0 %v489
        %v1578 = vpop.f32.mrf.mxu0
        %v1579 = vadd.f32 %v467, %v1578
        %v1580 = vpop.f32.mrf.mxu0
        %v1581 = vadd.f32 %v467, %v1580
        %1582 = vdwg.mxu0
        %1583 = vmatpush.bf16.msra.mxu0 %v1165
        %1584 = vmatpush.bf16.msra.mxu0 %v1159
        %1585 = vmatpush.bf16.msra.mxu0 %v1153
        %1586 = vmatpush.bf16.msra.mxu0 %v1147
        %1587 = vmatpush.bf16.msra.mxu0 %v1141
        %1588 = vmatpush.bf16.msra.mxu0 %v1135
        %1589 = vmatpush.bf16.msra.mxu0 %v1129
        %1590 = vmatpush.bf16.msra.mxu0 %v1123
        %1591 = vmatmul.bf16.gmra.mxu0 %v490
        %v1592 = vpop.f32.mrf.mxu0
        %v1593 = vadd.f32 %v1579, %v1592
        %v1594 = vpop.f32.mrf.mxu0
        %v1595 = vadd.f32 %v1581, %v1594
        %1596 = vdwg.mxu0
        %1597 = vmatpush.bf16.msra.mxu0 %v1213
        %1598 = vmatpush.bf16.msra.mxu0 %v1207
        %1599 = vmatpush.bf16.msra.mxu0 %v1201
        %1600 = vmatpush.bf16.msra.mxu0 %v1195
        %1601 = vmatpush.bf16.msra.mxu0 %v1189
        %1602 = vmatpush.bf16.msra.mxu0 %v1183
        %1603 = vmatpush.bf16.msra.mxu0 %v1177
        %1604 = vmatpush.bf16.msra.mxu0 %v1171
        %1605 = vmatmul.bf16.gmra.mxu0 %v491
        %v1606 = vpop.f32.mrf.mxu0
        %v1607 = vadd.f32 %v1593, %v1606
        %v1608 = vpop.f32.mrf.mxu0
        %v1609 = vadd.f32 %v1595, %v1608
        %1610 = vdwg.mxu0
        %1611 = vmatpush.bf16.msra.mxu0 %v1261
        %1612 = vmatpush.bf16.msra.mxu0 %v1255
        %1613 = vmatpush.bf16.msra.mxu0 %v1249
        %1614 = vmatpush.bf16.msra.mxu0 %v1243
        %1615 = vmatpush.bf16.msra.mxu0 %v1237
        %1616 = vmatpush.bf16.msra.mxu0 %v1231
        %1617 = vmatpush.bf16.msra.mxu0 %v1225
        %1618 = vmatpush.bf16.msra.mxu0 %v1219
        %1619 = vmatmul.bf16.gmra.mxu0 %v492
        %v1620 = vpop.f32.mrf.mxu0
        %v1621 = vadd.f32 %v1607, %v1620
        %v1622 = vpop.f32.mrf.mxu0
        %v1623 = vadd.f32 %v1609, %v1622
        %1624 = vdwg.mxu0
        %1625 = vmatpush.bf16.msra.mxu0 %v1118
        %1626 = vmatpush.bf16.msra.mxu0 %v1112
        %1627 = vmatpush.bf16.msra.mxu0 %v1106
        %1628 = vmatpush.bf16.msra.mxu0 %v1100
        %1629 = vmatpush.bf16.msra.mxu0 %v1094
        %1630 = vmatpush.bf16.msra.mxu0 %v1088
        %1631 = vmatpush.bf16.msra.mxu0 %v1082
        %1632 = vmatpush.bf16.msra.mxu0 %v1076
        %1633 = vmatmul.bf16.gmra.mxu0 %v489
        %v1634 = vpop.f32.mrf.mxu0
        %v1635 = vadd.f32 %v468, %v1634
        %v1636 = vpop.f32.mrf.mxu0
        %v1637 = vadd.f32 %v468, %v1636
        %1638 = vdwg.mxu0
        %1639 = vmatpush.bf16.msra.mxu0 %v1166
        %1640 = vmatpush.bf16.msra.mxu0 %v1160
        %1641 = vmatpush.bf16.msra.mxu0 %v1154
        %1642 = vmatpush.bf16.msra.mxu0 %v1148
        %1643 = vmatpush.bf16.msra.mxu0 %v1142
        %1644 = vmatpush.bf16.msra.mxu0 %v1136
        %1645 = vmatpush.bf16.msra.mxu0 %v1130
        %1646 = vmatpush.bf16.msra.mxu0 %v1124
        %1647 = vmatmul.bf16.gmra.mxu0 %v490
        %v1648 = vpop.f32.mrf.mxu0
        %v1649 = vadd.f32 %v1635, %v1648
        %v1650 = vpop.f32.mrf.mxu0
        %v1651 = vadd.f32 %v1637, %v1650
        %1652 = vdwg.mxu0
        %1653 = vmatpush.bf16.msra.mxu0 %v1214
        %1654 = vmatpush.bf16.msra.mxu0 %v1208
        %1655 = vmatpush.bf16.msra.mxu0 %v1202
        %1656 = vmatpush.bf16.msra.mxu0 %v1196
        %1657 = vmatpush.bf16.msra.mxu0 %v1190
        %1658 = vmatpush.bf16.msra.mxu0 %v1184
        %1659 = vmatpush.bf16.msra.mxu0 %v1178
        %1660 = vmatpush.bf16.msra.mxu0 %v1172
        %1661 = vmatmul.bf16.gmra.mxu0 %v491
        %v1662 = vpop.f32.mrf.mxu0
        %v1663 = vadd.f32 %v1649, %v1662
        %v1664 = vpop.f32.mrf.mxu0
        %v1665 = vadd.f32 %v1651, %v1664
        %1666 = vdwg.mxu0
        %1667 = vmatpush.bf16.msra.mxu0 %v1262
        %1668 = vmatpush.bf16.msra.mxu0 %v1256
        %1669 = vmatpush.bf16.msra.mxu0 %v1250
        %1670 = vmatpush.bf16.msra.mxu0 %v1244
        %1671 = vmatpush.bf16.msra.mxu0 %v1238
        %1672 = vmatpush.bf16.msra.mxu0 %v1232
        %1673 = vmatpush.bf16.msra.mxu0 %v1226
        %1674 = vmatpush.bf16.msra.mxu0 %v1220
        %1675 = vmatmul.bf16.gmra.mxu0 %v492
        %v1676 = vpop.f32.mrf.mxu0
        %v1677 = vadd.f32 %v1663, %v1676
        %v1678 = vpop.f32.mrf.mxu0
        %v1679 = vadd.f32 %v1665, %v1678
        %1680 = vdwg.mxu0
        %1681 = vmatpush.bf16.msra.mxu0 %v1119
        %1682 = vmatpush.bf16.msra.mxu0 %v1113
        %1683 = vmatpush.bf16.msra.mxu0 %v1107
        %1684 = vmatpush.bf16.msra.mxu0 %v1101
        %1685 = vmatpush.bf16.msra.mxu0 %v1095
        %1686 = vmatpush.bf16.msra.mxu0 %v1089
        %1687 = vmatpush.bf16.msra.mxu0 %v1083
        %1688 = vmatpush.bf16.msra.mxu0 %v1077
        %1689 = vmatmul.bf16.gmra.mxu0 %v489
        %v1690 = vpop.f32.mrf.mxu0
        %v1691 = vadd.f32 %v469, %v1690
        %v1692 = vpop.f32.mrf.mxu0
        %v1693 = vadd.f32 %v469, %v1692
        %1694 = vdwg.mxu0
        %1695 = vmatpush.bf16.msra.mxu0 %v1167
        %1696 = vmatpush.bf16.msra.mxu0 %v1161
        %1697 = vmatpush.bf16.msra.mxu0 %v1155
        %1698 = vmatpush.bf16.msra.mxu0 %v1149
        %1699 = vmatpush.bf16.msra.mxu0 %v1143
        %1700 = vmatpush.bf16.msra.mxu0 %v1137
        %1701 = vmatpush.bf16.msra.mxu0 %v1131
        %1702 = vmatpush.bf16.msra.mxu0 %v1125
        %1703 = vmatmul.bf16.gmra.mxu0 %v490
        %v1704 = vpop.f32.mrf.mxu0
        %v1705 = vadd.f32 %v1691, %v1704
        %v1706 = vpop.f32.mrf.mxu0
        %v1707 = vadd.f32 %v1693, %v1706
        %1708 = vdwg.mxu0
        %1709 = vmatpush.bf16.msra.mxu0 %v1215
        %1710 = vmatpush.bf16.msra.mxu0 %v1209
        %1711 = vmatpush.bf16.msra.mxu0 %v1203
        %1712 = vmatpush.bf16.msra.mxu0 %v1197
        %1713 = vmatpush.bf16.msra.mxu0 %v1191
        %1714 = vmatpush.bf16.msra.mxu0 %v1185
        %1715 = vmatpush.bf16.msra.mxu0 %v1179
        %1716 = vmatpush.bf16.msra.mxu0 %v1173
        %1717 = vmatmul.bf16.gmra.mxu0 %v491
        %v1718 = vpop.f32.mrf.mxu0
        %v1719 = vadd.f32 %v1705, %v1718
        %v1720 = vpop.f32.mrf.mxu0
        %v1721 = vadd.f32 %v1707, %v1720
        %1722 = vdwg.mxu0
        %1723 = vmatpush.bf16.msra.mxu0 %v1263
        %1724 = vmatpush.bf16.msra.mxu0 %v1257
        %1725 = vmatpush.bf16.msra.mxu0 %v1251
        %1726 = vmatpush.bf16.msra.mxu0 %v1245
        %1727 = vmatpush.bf16.msra.mxu0 %v1239
        %1728 = vmatpush.bf16.msra.mxu0 %v1233
        %1729 = vmatpush.bf16.msra.mxu0 %v1227
        %1730 = vmatpush.bf16.msra.mxu0 %v1221
        %1731 = vmatmul.bf16.gmra.mxu0 %v492
        %v1732 = vpop.f32.mrf.mxu0
        %v1733 = vadd.f32 %v1719, %v1732
        %v1734 = vpop.f32.mrf.mxu0
        %v1735 = vadd.f32 %v1721, %v1734
        %1736 = vdwg.mxu0
        %1737 = vmatpush.bf16.msra.mxu0 %v1120
        %1738 = vmatpush.bf16.msra.mxu0 %v1114
        %1739 = vmatpush.bf16.msra.mxu0 %v1108
        %1740 = vmatpush.bf16.msra.mxu0 %v1102
        %1741 = vmatpush.bf16.msra.mxu0 %v1096
        %1742 = vmatpush.bf16.msra.mxu0 %v1090
        %1743 = vmatpush.bf16.msra.mxu0 %v1084
        %1744 = vmatpush.bf16.msra.mxu0 %v1078
        %1745 = vmatmul.bf16.gmra.mxu0 %v489
        %v1746 = vpop.f32.mrf.mxu0
        %v1747 = vadd.f32 %v470, %v1746
        %v1748 = vpop.f32.mrf.mxu0
        %v1749 = vadd.f32 %v470, %v1748
        %1750 = vdwg.mxu0
        %1751 = vmatpush.bf16.msra.mxu0 %v1168
        %1752 = vmatpush.bf16.msra.mxu0 %v1162
        %1753 = vmatpush.bf16.msra.mxu0 %v1156
        %1754 = vmatpush.bf16.msra.mxu0 %v1150
        %1755 = vmatpush.bf16.msra.mxu0 %v1144
        %1756 = vmatpush.bf16.msra.mxu0 %v1138
        %1757 = vmatpush.bf16.msra.mxu0 %v1132
        %1758 = vmatpush.bf16.msra.mxu0 %v1126
        %1759 = vmatmul.bf16.gmra.mxu0 %v490
        %v1760 = vpop.f32.mrf.mxu0
        %v1761 = vadd.f32 %v1747, %v1760
        %v1762 = vpop.f32.mrf.mxu0
        %v1763 = vadd.f32 %v1749, %v1762
        %1764 = vdwg.mxu0
        %1765 = vmatpush.bf16.msra.mxu0 %v1216
        %1766 = vmatpush.bf16.msra.mxu0 %v1210
        %1767 = vmatpush.bf16.msra.mxu0 %v1204
        %1768 = vmatpush.bf16.msra.mxu0 %v1198
        %1769 = vmatpush.bf16.msra.mxu0 %v1192
        %1770 = vmatpush.bf16.msra.mxu0 %v1186
        %1771 = vmatpush.bf16.msra.mxu0 %v1180
        %1772 = vmatpush.bf16.msra.mxu0 %v1174
        %1773 = vmatmul.bf16.gmra.mxu0 %v491
        %v1774 = vpop.f32.mrf.mxu0
        %v1775 = vadd.f32 %v1761, %v1774
        %v1776 = vpop.f32.mrf.mxu0
        %v1777 = vadd.f32 %v1763, %v1776
        %1778 = vdwg.mxu0
        %1779 = vmatpush.bf16.msra.mxu0 %v1264
        %1780 = vmatpush.bf16.msra.mxu0 %v1258
        %1781 = vmatpush.bf16.msra.mxu0 %v1252
        %1782 = vmatpush.bf16.msra.mxu0 %v1246
        %1783 = vmatpush.bf16.msra.mxu0 %v1240
        %1784 = vmatpush.bf16.msra.mxu0 %v1234
        %1785 = vmatpush.bf16.msra.mxu0 %v1228
        %1786 = vmatpush.bf16.msra.mxu0 %v1222
        %1787 = vmatmul.bf16.gmra.mxu0 %v492
        %v1788 = vpop.f32.mrf.mxu0
        %v1789 = vadd.f32 %v1775, %v1788
        %v1790 = vpop.f32.mrf.mxu0
        %v1791 = vadd.f32 %v1777, %v1790
        %1792 = vdwg.mxu0
        %v1793 = vmax.f32 %v1509, 0.0
        %v1794 = vmax.f32 %v1565, 0.0
        %v1795 = vmax.f32 %v1621, 0.0
        %v1796 = vmax.f32 %v1677, 0.0
        %v1797 = vmax.f32 %v1733, 0.0
        %v1798 = vmax.f32 %v1789, 0.0
        %v1799 = vmax.f32 %v1511, 0.0
        %v1800 = vmax.f32 %v1567, 0.0
        %v1801 = vmax.f32 %v1623, 0.0
        %v1802 = vmax.f32 %v1679, 0.0
        %v1803 = vmax.f32 %v1735, 0.0
        %v1804 = vmax.f32 %v1791, 0.0
        %v1805 = vpack.c.bf16 %v1799, %v1793
        %v1806 = vpack.c.bf16 %v1800, %v1794
        %v1807 = vpack.c.bf16 %v1801, %v1795
        %v1808 = vpack.c.bf16 %v1802, %v1796
        %v1809 = vpack.c.bf16 %v1803, %v1797
        %v1810 = vpack.c.bf16 %v1804, %v1798
        %v1811 = vld [vmem:[#allocation4] sm:$0xff]
        %v1812 = vld [vmem:[#allocation4 + $0x8] sm:$0xff]
        %v1813 = vld [vmem:[#allocation4 + $0x10] sm:$0xff]
        %v1814 = vld [vmem:[#allocation4 + $0x18] sm:$0xff]
        %v1815 = vld [vmem:[#allocation4 + $0x20] sm:$0xff]
        %v1816 = vld [vmem:[#allocation4 + $0x28] sm:$0xff]
        %v1817 = vld [vmem:[#allocation4 + $0x30] sm:$0xff]
        %v1818 = vld [vmem:[#allocation4 + $0x38] sm:$0xff]
        %v1819 = vld [vmem:[#allocation4 + $0x40] sm:$0xff]
        %v1820 = vld [vmem:[#allocation4 + $0x48] sm:$0xff]
        %v1821 = vld [vmem:[#allocation4 + $0x50] sm:$0xff]
        %v1822 = vld [vmem:[#allocation4 + $0x58] sm:$0xff]
        %v1823 = vld [vmem:[#allocation4 + $0x60] sm:$0xff]
        %v1824 = vld [vmem:[#allocation4 + $0x68] sm:$0xff]
        %v1825 = vld [vmem:[#allocation4 + $0x70] sm:$0xff]
        %v1826 = vld [vmem:[#allocation4 + $0x78] sm:$0xff]
        %v1827 = vld [vmem:[#allocation4 + $0x80] sm:$0xff]
        %v1828 = vld [vmem:[#allocation4 + $0x88] sm:$0xff]
        %v1829 = vld [vmem:[#allocation4 + $0x90] sm:$0xff]
        %v1830 = vld [vmem:[#allocation4 + $0x98] sm:$0xff]
        %v1831 = vld [vmem:[#allocation4 + $0xa0] sm:$0xff]
        %v1832 = vld [vmem:[#allocation4 + $0xa8] sm:$0xff]
        %v1833 = vld [vmem:[#allocation4 + $0xb0] sm:$0xff]
        %v1834 = vld [vmem:[#allocation4 + $0xb8] sm:$0xff]
        %v1835 = vld [vmem:[#allocation4 + $0xc0] sm:$0xff]
        %v1836 = vld [vmem:[#allocation4 + $0xc8] sm:$0xff]
        %v1837 = vld [vmem:[#allocation4 + $0xd0] sm:$0xff]
        %v1838 = vld [vmem:[#allocation4 + $0xd8] sm:$0xff]
        %v1839 = vld [vmem:[#allocation4 + $0xe0] sm:$0xff]
        %v1840 = vld [vmem:[#allocation4 + $0xe8] sm:$0xff]
        %v1841 = vld [vmem:[#allocation4 + $0xf0] sm:$0xff]
        %v1842 = vld [vmem:[#allocation4 + $0xf8] sm:$0xff]
        %v1843 = vld [vmem:[#allocation4 + $0x100] sm:$0xff]
        %v1844 = vld [vmem:[#allocation4 + $0x108] sm:$0xff]
        %v1845 = vld [vmem:[#allocation4 + $0x110] sm:$0xff]
        %v1846 = vld [vmem:[#allocation4 + $0x118] sm:$0xff]
        %v1847 = vld [vmem:[#allocation4 + $0x120] sm:$0xff]
        %v1848 = vld [vmem:[#allocation4 + $0x128] sm:$0xff]
        %v1849 = vld [vmem:[#allocation4 + $0x130] sm:$0xff]
        %v1850 = vld [vmem:[#allocation4 + $0x138] sm:$0xff]
        %v1851 = vld [vmem:[#allocation4 + $0x140] sm:$0xff]
        %v1852 = vld [vmem:[#allocation4 + $0x148] sm:$0xff]
        %v1853 = vld [vmem:[#allocation4 + $0x150] sm:$0xff]
        %v1854 = vld [vmem:[#allocation4 + $0x158] sm:$0xff]
        %v1855 = vld [vmem:[#allocation4 + $0x160] sm:$0xff]
        %v1856 = vld [vmem:[#allocation4 + $0x168] sm:$0xff]
        %v1857 = vld [vmem:[#allocation4 + $0x170] sm:$0xff]
        %v1858 = vld [vmem:[#allocation4 + $0x178] sm:$0xff]
        %v1859 = vld [vmem:[#allocation4 + $0x180] sm:$0xff]
        %v1860 = vld [vmem:[#allocation4 + $0x188] sm:$0xff]
        %v1861 = vld [vmem:[#allocation4 + $0x190] sm:$0xff]
        %v1862 = vld [vmem:[#allocation4 + $0x198] sm:$0xff]
        %v1863 = vld [vmem:[#allocation4 + $0x1a0] sm:$0xff]
        %v1864 = vld [vmem:[#allocation4 + $0x1a8] sm:$0xff]
        %v1865 = vld [vmem:[#allocation4 + $0x1b0] sm:$0xff]
        %v1866 = vld [vmem:[#allocation4 + $0x1b8] sm:$0xff]
        %v1867 = vld [vmem:[#allocation4 + $0x1c0] sm:$0xff]
        %v1868 = vld [vmem:[#allocation4 + $0x1c8] sm:$0xff]
        %v1869 = vld [vmem:[#allocation4 + $0x1d0] sm:$0xff]
        %v1870 = vld [vmem:[#allocation4 + $0x1d8] sm:$0xff]
        %v1871 = vld [vmem:[#allocation4 + $0x1e0] sm:$0xff]
        %v1872 = vld [vmem:[#allocation4 + $0x1e8] sm:$0xff]
        %v1873 = vld [vmem:[#allocation4 + $0x1f0] sm:$0xff]
        %v1874 = vld [vmem:[#allocation4 + $0x1f8] sm:$0xff]
        %v1875 = vld [vmem:[#allocation4 + $0x200] sm:$0xff]
        %v1876 = vld [vmem:[#allocation4 + $0x208] sm:$0xff]
        %v1877 = vld [vmem:[#allocation4 + $0x210] sm:$0xff]
        %v1878 = vld [vmem:[#allocation4 + $0x218] sm:$0xff]
        %v1879 = vld [vmem:[#allocation4 + $0x220] sm:$0xff]
        %v1880 = vld [vmem:[#allocation4 + $0x228] sm:$0xff]
        %v1881 = vld [vmem:[#allocation4 + $0x230] sm:$0xff]
        %v1882 = vld [vmem:[#allocation4 + $0x238] sm:$0xff]
        %v1883 = vld [vmem:[#allocation4 + $0x240] sm:$0xff]
        %v1884 = vld [vmem:[#allocation4 + $0x248] sm:$0xff]
        %v1885 = vld [vmem:[#allocation4 + $0x250] sm:$0xff]
        %v1886 = vld [vmem:[#allocation4 + $0x258] sm:$0xff]
        %v1887 = vld [vmem:[#allocation4 + $0x260] sm:$0xff]
        %v1888 = vld [vmem:[#allocation4 + $0x268] sm:$0xff]
        %v1889 = vld [vmem:[#allocation4 + $0x270] sm:$0xff]
        %v1890 = vld [vmem:[#allocation4 + $0x278] sm:$0xff]
        %v1891 = vld [vmem:[#allocation4 + $0x280] sm:$0xff]
        %v1892 = vld [vmem:[#allocation4 + $0x288] sm:$0xff]
        %v1893 = vld [vmem:[#allocation4 + $0x290] sm:$0xff]
        %v1894 = vld [vmem:[#allocation4 + $0x298] sm:$0xff]
        %v1895 = vld [vmem:[#allocation4 + $0x2a0] sm:$0xff]
        %v1896 = vld [vmem:[#allocation4 + $0x2a8] sm:$0xff]
        %v1897 = vld [vmem:[#allocation4 + $0x2b0] sm:$0xff]
        %v1898 = vld [vmem:[#allocation4 + $0x2b8] sm:$0xff]
        %v1899 = vld [vmem:[#allocation4 + $0x2c0] sm:$0xff]
        %v1900 = vld [vmem:[#allocation4 + $0x2c8] sm:$0xff]
        %v1901 = vld [vmem:[#allocation4 + $0x2d0] sm:$0xff]
        %v1902 = vld [vmem:[#allocation4 + $0x2d8] sm:$0xff]
        %v1903 = vld [vmem:[#allocation4 + $0x2e0] sm:$0xff]
        %v1904 = vld [vmem:[#allocation4 + $0x2e8] sm:$0xff]
        %v1905 = vld [vmem:[#allocation4 + $0x2f0] sm:$0xff]
        %v1906 = vld [vmem:[#allocation4 + $0x2f8] sm:$0xff]
        %v1907 = vld [vmem:[%s4] sm:$0x3]
        %v1909 = vperm.slane %v1907, 0
        %v1910 = vperm.slane %v1907, 1
        %v2009 = vunpack.c.l.b16 %v1811
        %v2010 = vunpack.c.h.b16 %v1811
        %v2011 = vunpack.c.l.b16 %v1812
        %v2012 = vunpack.c.h.b16 %v1812
        %v2013 = vunpack.c.l.b16 %v1813
        %v2014 = vunpack.c.h.b16 %v1813
        %v2015 = vunpack.c.l.b16 %v1814
        %v2016 = vunpack.c.h.b16 %v1814
        %v2017 = vunpack.c.l.b16 %v1815
        %v2018 = vunpack.c.h.b16 %v1815
        %v2019 = vunpack.c.l.b16 %v1816
        %v2020 = vunpack.c.h.b16 %v1816
        %v2021 = vunpack.c.l.b16 %v1817
        %v2022 = vunpack.c.h.b16 %v1817
        %v2023 = vunpack.c.l.b16 %v1818
        %v2024 = vunpack.c.h.b16 %v1818
        %v2025 = vunpack.c.l.b16 %v1819
        %v2026 = vunpack.c.h.b16 %v1819
        %v2027 = vunpack.c.l.b16 %v1820
        %v2028 = vunpack.c.h.b16 %v1820
        %v2029 = vunpack.c.l.b16 %v1821
        %v2030 = vunpack.c.h.b16 %v1821
        %v2031 = vunpack.c.l.b16 %v1822
        %v2032 = vunpack.c.h.b16 %v1822
        %v2033 = vunpack.c.l.b16 %v1823
        %v2034 = vunpack.c.h.b16 %v1823
        %v2035 = vunpack.c.l.b16 %v1824
        %v2036 = vunpack.c.h.b16 %v1824
        %v2037 = vunpack.c.l.b16 %v1825
        %v2038 = vunpack.c.h.b16 %v1825
        %v2039 = vunpack.c.l.b16 %v1826
        %v2040 = vunpack.c.h.b16 %v1826
        %v2041 = vunpack.c.l.b16 %v1827
        %v2042 = vunpack.c.h.b16 %v1827
        %v2043 = vunpack.c.l.b16 %v1828
        %v2044 = vunpack.c.h.b16 %v1828
        %v2045 = vunpack.c.l.b16 %v1829
        %v2046 = vunpack.c.h.b16 %v1829
        %v2047 = vunpack.c.l.b16 %v1830
        %v2048 = vunpack.c.h.b16 %v1830
        %v2049 = vunpack.c.l.b16 %v1831
        %v2050 = vunpack.c.h.b16 %v1831
        %v2051 = vunpack.c.l.b16 %v1832
        %v2052 = vunpack.c.h.b16 %v1832
        %v2053 = vunpack.c.l.b16 %v1833
        %v2054 = vunpack.c.h.b16 %v1833
        %v2055 = vunpack.c.l.b16 %v1834
        %v2056 = vunpack.c.h.b16 %v1834
        %v2057 = vunpack.c.l.b16 %v1835
        %v2058 = vunpack.c.h.b16 %v1835
        %v2059 = vunpack.c.l.b16 %v1836
        %v2060 = vunpack.c.h.b16 %v1836
        %v2061 = vunpack.c.l.b16 %v1837
        %v2062 = vunpack.c.h.b16 %v1837
        %v2063 = vunpack.c.l.b16 %v1838
        %v2064 = vunpack.c.h.b16 %v1838
        %v2065 = vunpack.c.l.b16 %v1839
        %v2066 = vunpack.c.h.b16 %v1839
        %v2067 = vunpack.c.l.b16 %v1840
        %v2068 = vunpack.c.h.b16 %v1840
        %v2069 = vunpack.c.l.b16 %v1841
        %v2070 = vunpack.c.h.b16 %v1841
        %v2071 = vunpack.c.l.b16 %v1842
        %v2072 = vunpack.c.h.b16 %v1842
        %v2073 = vunpack.c.l.b16 %v1843
        %v2074 = vunpack.c.h.b16 %v1843
        %v2075 = vunpack.c.l.b16 %v1844
        %v2076 = vunpack.c.h.b16 %v1844
        %v2077 = vunpack.c.l.b16 %v1845
        %v2078 = vunpack.c.h.b16 %v1845
        %v2079 = vunpack.c.l.b16 %v1846
        %v2080 = vunpack.c.h.b16 %v1846
        %v2081 = vunpack.c.l.b16 %v1847
        %v2082 = vunpack.c.h.b16 %v1847
        %v2083 = vunpack.c.l.b16 %v1848
        %v2084 = vunpack.c.h.b16 %v1848
        %v2085 = vunpack.c.l.b16 %v1849
        %v2086 = vunpack.c.h.b16 %v1849
        %v2087 = vunpack.c.l.b16 %v1850
        %v2088 = vunpack.c.h.b16 %v1850
        %v2089 = vunpack.c.l.b16 %v1851
        %v2090 = vunpack.c.h.b16 %v1851
        %v2091 = vunpack.c.l.b16 %v1852
        %v2092 = vunpack.c.h.b16 %v1852
        %v2093 = vunpack.c.l.b16 %v1853
        %v2094 = vunpack.c.h.b16 %v1853
        %v2095 = vunpack.c.l.b16 %v1854
        %v2096 = vunpack.c.h.b16 %v1854
        %v2097 = vunpack.c.l.b16 %v1855
        %v2098 = vunpack.c.h.b16 %v1855
        %v2099 = vunpack.c.l.b16 %v1856
        %v2100 = vunpack.c.h.b16 %v1856
        %v2101 = vunpack.c.l.b16 %v1857
        %v2102 = vunpack.c.h.b16 %v1857
        %v2103 = vunpack.c.l.b16 %v1858
        %v2104 = vunpack.c.h.b16 %v1858
        %v2105 = vunpack.c.l.b16 %v1859
        %v2106 = vunpack.c.h.b16 %v1859
        %v2107 = vunpack.c.l.b16 %v1860
        %v2108 = vunpack.c.h.b16 %v1860
        %v2109 = vunpack.c.l.b16 %v1861
        %v2110 = vunpack.c.h.b16 %v1861
        %v2111 = vunpack.c.l.b16 %v1862
        %v2112 = vunpack.c.h.b16 %v1862
        %v2113 = vunpack.c.l.b16 %v1863
        %v2114 = vunpack.c.h.b16 %v1863
        %v2115 = vunpack.c.l.b16 %v1864
        %v2116 = vunpack.c.h.b16 %v1864
        %v2117 = vunpack.c.l.b16 %v1865
        %v2118 = vunpack.c.h.b16 %v1865
        %v2119 = vunpack.c.l.b16 %v1866
        %v2120 = vunpack.c.h.b16 %v1866
        %v2121 = vunpack.c.l.b16 %v1867
        %v2122 = vunpack.c.h.b16 %v1867
        %v2123 = vunpack.c.l.b16 %v1868
        %v2124 = vunpack.c.h.b16 %v1868
        %v2125 = vunpack.c.l.b16 %v1869
        %v2126 = vunpack.c.h.b16 %v1869
        %v2127 = vunpack.c.l.b16 %v1870
        %v2128 = vunpack.c.h.b16 %v1870
        %v2129 = vunpack.c.l.b16 %v1871
        %v2130 = vunpack.c.h.b16 %v1871
        %v2131 = vunpack.c.l.b16 %v1872
        %v2132 = vunpack.c.h.b16 %v1872
        %v2133 = vunpack.c.l.b16 %v1873
        %v2134 = vunpack.c.h.b16 %v1873
        %v2135 = vunpack.c.l.b16 %v1874
        %v2136 = vunpack.c.h.b16 %v1874
        %v2137 = vunpack.c.l.b16 %v1875
        %v2138 = vunpack.c.h.b16 %v1875
        %v2139 = vunpack.c.l.b16 %v1876
        %v2140 = vunpack.c.h.b16 %v1876
        %v2141 = vunpack.c.l.b16 %v1877
        %v2142 = vunpack.c.h.b16 %v1877
        %v2143 = vunpack.c.l.b16 %v1878
        %v2144 = vunpack.c.h.b16 %v1878
        %v2145 = vunpack.c.l.b16 %v1879
        %v2146 = vunpack.c.h.b16 %v1879
        %v2147 = vunpack.c.l.b16 %v1880
        %v2148 = vunpack.c.h.b16 %v1880
        %v2149 = vunpack.c.l.b16 %v1881
        %v2150 = vunpack.c.h.b16 %v1881
        %v2151 = vunpack.c.l.b16 %v1882
        %v2152 = vunpack.c.h.b16 %v1882
        %v2153 = vunpack.c.l.b16 %v1883
        %v2154 = vunpack.c.h.b16 %v1883
        %v2155 = vunpack.c.l.b16 %v1884
        %v2156 = vunpack.c.h.b16 %v1884
        %v2157 = vunpack.c.l.b16 %v1885
        %v2158 = vunpack.c.h.b16 %v1885
        %v2159 = vunpack.c.l.b16 %v1886
        %v2160 = vunpack.c.h.b16 %v1886
        %v2161 = vunpack.c.l.b16 %v1887
        %v2162 = vunpack.c.h.b16 %v1887
        %v2163 = vunpack.c.l.b16 %v1888
        %v2164 = vunpack.c.h.b16 %v1888
        %v2165 = vunpack.c.l.b16 %v1889
        %v2166 = vunpack.c.h.b16 %v1889
        %v2167 = vunpack.c.l.b16 %v1890
        %v2168 = vunpack.c.h.b16 %v1890
        %v2169 = vunpack.c.l.b16 %v1891
        %v2170 = vunpack.c.h.b16 %v1891
        %v2171 = vunpack.c.l.b16 %v1892
        %v2172 = vunpack.c.h.b16 %v1892
        %v2173 = vunpack.c.l.b16 %v1893
        %v2174 = vunpack.c.h.b16 %v1893
        %v2175 = vunpack.c.l.b16 %v1894
        %v2176 = vunpack.c.h.b16 %v1894
        %v2177 = vunpack.c.l.b16 %v1895
        %v2178 = vunpack.c.h.b16 %v1895
        %v2179 = vunpack.c.l.b16 %v1896
        %v2180 = vunpack.c.h.b16 %v1896
        %v2181 = vunpack.c.l.b16 %v1897
        %v2182 = vunpack.c.h.b16 %v1897
        %v2183 = vunpack.c.l.b16 %v1898
        %v2184 = vunpack.c.h.b16 %v1898
        %v2185 = vunpack.c.l.b16 %v1899
        %v2186 = vunpack.c.h.b16 %v1899
        %v2187 = vunpack.c.l.b16 %v1900
        %v2188 = vunpack.c.h.b16 %v1900
        %v2189 = vunpack.c.l.b16 %v1901
        %v2190 = vunpack.c.h.b16 %v1901
        %v2191 = vunpack.c.l.b16 %v1902
        %v2192 = vunpack.c.h.b16 %v1902
        %v2193 = vunpack.c.l.b16 %v1903
        %v2194 = vunpack.c.h.b16 %v1903
        %v2195 = vunpack.c.l.b16 %v1904
        %v2196 = vunpack.c.h.b16 %v1904
        %v2197 = vunpack.c.l.b16 %v1905
        %v2198 = vunpack.c.h.b16 %v1905
        %v2199 = vunpack.c.l.b16 %v1906
        %v2200 = vunpack.c.h.b16 %v1906
        %v2201 = vpack.c.b16 %v2011, %v2009
        %v2202 = vpack.c.b16 %v2012, %v2010
        %v2203 = vpack.c.b16 %v2015, %v2013
        %v2204 = vpack.c.b16 %v2016, %v2014
        %v2205 = vpack.c.b16 %v2019, %v2017
        %v2206 = vpack.c.b16 %v2020, %v2018
        %v2207 = vpack.c.b16 %v2023, %v2021
        %v2208 = vpack.c.b16 %v2024, %v2022
        %v2209 = vpack.c.b16 %v2027, %v2025
        %v2210 = vpack.c.b16 %v2028, %v2026
        %v2211 = vpack.c.b16 %v2031, %v2029
        %v2212 = vpack.c.b16 %v2032, %v2030
        %v2213 = vpack.c.b16 %v2035, %v2033
        %v2214 = vpack.c.b16 %v2036, %v2034
        %v2215 = vpack.c.b16 %v2039, %v2037
        %v2216 = vpack.c.b16 %v2040, %v2038
        %v2217 = vpack.c.b16 %v2043, %v2041
        %v2218 = vpack.c.b16 %v2044, %v2042
        %v2219 = vpack.c.b16 %v2047, %v2045
        %v2220 = vpack.c.b16 %v2048, %v2046
        %v2221 = vpack.c.b16 %v2051, %v2049
        %v2222 = vpack.c.b16 %v2052, %v2050
        %v2223 = vpack.c.b16 %v2055, %v2053
        %v2224 = vpack.c.b16 %v2056, %v2054
        %v2225 = vpack.c.b16 %v2059, %v2057
        %v2226 = vpack.c.b16 %v2060, %v2058
        %v2227 = vpack.c.b16 %v2063, %v2061
        %v2228 = vpack.c.b16 %v2064, %v2062
        %v2229 = vpack.c.b16 %v2067, %v2065
        %v2230 = vpack.c.b16 %v2068, %v2066
        %v2231 = vpack.c.b16 %v2071, %v2069
        %v2232 = vpack.c.b16 %v2072, %v2070
        %v2233 = vpack.c.b16 %v2075, %v2073
        %v2234 = vpack.c.b16 %v2076, %v2074
        %v2235 = vpack.c.b16 %v2079, %v2077
        %v2236 = vpack.c.b16 %v2080, %v2078
        %v2237 = vpack.c.b16 %v2083, %v2081
        %v2238 = vpack.c.b16 %v2084, %v2082
        %v2239 = vpack.c.b16 %v2087, %v2085
        %v2240 = vpack.c.b16 %v2088, %v2086
        %v2241 = vpack.c.b16 %v2091, %v2089
        %v2242 = vpack.c.b16 %v2092, %v2090
        %v2243 = vpack.c.b16 %v2095, %v2093
        %v2244 = vpack.c.b16 %v2096, %v2094
        %v2245 = vpack.c.b16 %v2099, %v2097
        %v2246 = vpack.c.b16 %v2100, %v2098
        %v2247 = vpack.c.b16 %v2103, %v2101
        %v2248 = vpack.c.b16 %v2104, %v2102
        %v2249 = vpack.c.b16 %v2107, %v2105
        %v2250 = vpack.c.b16 %v2108, %v2106
        %v2251 = vpack.c.b16 %v2111, %v2109
        %v2252 = vpack.c.b16 %v2112, %v2110
        %v2253 = vpack.c.b16 %v2115, %v2113
        %v2254 = vpack.c.b16 %v2116, %v2114
        %v2255 = vpack.c.b16 %v2119, %v2117
        %v2256 = vpack.c.b16 %v2120, %v2118
        %v2257 = vpack.c.b16 %v2123, %v2121
        %v2258 = vpack.c.b16 %v2124, %v2122
        %v2259 = vpack.c.b16 %v2127, %v2125
        %v2260 = vpack.c.b16 %v2128, %v2126
        %v2261 = vpack.c.b16 %v2131, %v2129
        %v2262 = vpack.c.b16 %v2132, %v2130
        %v2263 = vpack.c.b16 %v2135, %v2133
        %v2264 = vpack.c.b16 %v2136, %v2134
        %v2265 = vpack.c.b16 %v2139, %v2137
        %v2266 = vpack.c.b16 %v2140, %v2138
        %v2267 = vpack.c.b16 %v2143, %v2141
        %v2268 = vpack.c.b16 %v2144, %v2142
        %v2269 = vpack.c.b16 %v2147, %v2145
        %v2270 = vpack.c.b16 %v2148, %v2146
        %v2271 = vpack.c.b16 %v2151, %v2149
        %v2272 = vpack.c.b16 %v2152, %v2150
        %v2273 = vpack.c.b16 %v2155, %v2153
        %v2274 = vpack.c.b16 %v2156, %v2154
        %v2275 = vpack.c.b16 %v2159, %v2157
        %v2276 = vpack.c.b16 %v2160, %v2158
        %v2277 = vpack.c.b16 %v2163, %v2161
        %v2278 = vpack.c.b16 %v2164, %v2162
        %v2279 = vpack.c.b16 %v2167, %v2165
        %v2280 = vpack.c.b16 %v2168, %v2166
        %v2281 = vpack.c.b16 %v2171, %v2169
        %v2282 = vpack.c.b16 %v2172, %v2170
        %v2283 = vpack.c.b16 %v2175, %v2173
        %v2284 = vpack.c.b16 %v2176, %v2174
        %v2285 = vpack.c.b16 %v2179, %v2177
        %v2286 = vpack.c.b16 %v2180, %v2178
        %v2287 = vpack.c.b16 %v2183, %v2181
        %v2288 = vpack.c.b16 %v2184, %v2182
        %v2289 = vpack.c.b16 %v2187, %v2185
        %v2290 = vpack.c.b16 %v2188, %v2186
        %v2291 = vpack.c.b16 %v2191, %v2189
        %v2292 = vpack.c.b16 %v2192, %v2190
        %v2293 = vpack.c.b16 %v2195, %v2193
        %v2294 = vpack.c.b16 %v2196, %v2194
        %v2295 = vpack.c.b16 %v2199, %v2197
        %v2296 = vpack.c.b16 %v2200, %v2198
        %2393 = vmatpush.bf16.msra.mxu0 %v2215
        %2394 = vmatpush.bf16.msra.mxu0 %v2213
        %2395 = vmatpush.bf16.msra.mxu0 %v2211
        %2396 = vmatpush.bf16.msra.mxu0 %v2209
        %2397 = vmatpush.bf16.msra.mxu0 %v2207
        %2398 = vmatpush.bf16.msra.mxu0 %v2205
        %2399 = vmatpush.bf16.msra.mxu0 %v2203
        %2400 = vmatpush.bf16.msra.mxu0 %v2201
        %2401 = vmatmul.bf16.gmra.mxu0 %v1805
        %v2402 = vpop.f32.mrf.mxu0
        %v2403 = vadd.f32 %v1909, %v2402
        %v2404 = vpop.f32.mrf.mxu0
        %v2405 = vadd.f32 %v1909, %v2404
        %2406 = vdwg.mxu0
        %2407 = vmatpush.bf16.msra.mxu0 %v2231
        %2408 = vmatpush.bf16.msra.mxu0 %v2229
        %2409 = vmatpush.bf16.msra.mxu0 %v2227
        %2410 = vmatpush.bf16.msra.mxu0 %v2225
        %2411 = vmatpush.bf16.msra.mxu0 %v2223
        %2412 = vmatpush.bf16.msra.mxu0 %v2221
        %2413 = vmatpush.bf16.msra.mxu0 %v2219
        %2414 = vmatpush.bf16.msra.mxu0 %v2217
        %2415 = vmatmul.bf16.gmra.mxu0 %v1806
        %v2416 = vpop.f32.mrf.mxu0
        %v2417 = vadd.f32 %v2403, %v2416
        %v2418 = vpop.f32.mrf.mxu0
        %v2419 = vadd.f32 %v2405, %v2418
        %2420 = vdwg.mxu0
        %2421 = vmatpush.bf16.msra.mxu0 %v2247
        %2422 = vmatpush.bf16.msra.mxu0 %v2245
        %2423 = vmatpush.bf16.msra.mxu0 %v2243
        %2424 = vmatpush.bf16.msra.mxu0 %v2241
        %2425 = vmatpush.bf16.msra.mxu0 %v2239
        %2426 = vmatpush.bf16.msra.mxu0 %v2237
        %2427 = vmatpush.bf16.msra.mxu0 %v2235
        %2428 = vmatpush.bf16.msra.mxu0 %v2233
        %2429 = vmatmul.bf16.gmra.mxu0 %v1807
        %v2430 = vpop.f32.mrf.mxu0
        %v2431 = vadd.f32 %v2417, %v2430
        %v2432 = vpop.f32.mrf.mxu0
        %v2433 = vadd.f32 %v2419, %v2432
        %2434 = vdwg.mxu0
        %2435 = vmatpush.bf16.msra.mxu0 %v2263
        %2436 = vmatpush.bf16.msra.mxu0 %v2261
        %2437 = vmatpush.bf16.msra.mxu0 %v2259
        %2438 = vmatpush.bf16.msra.mxu0 %v2257
        %2439 = vmatpush.bf16.msra.mxu0 %v2255
        %2440 = vmatpush.bf16.msra.mxu0 %v2253
        %2441 = vmatpush.bf16.msra.mxu0 %v2251
        %2442 = vmatpush.bf16.msra.mxu0 %v2249
        %2443 = vmatmul.bf16.gmra.mxu0 %v1808
        %v2444 = vpop.f32.mrf.mxu0
        %v2445 = vadd.f32 %v2431, %v2444
        %v2446 = vpop.f32.mrf.mxu0
        %v2447 = vadd.f32 %v2433, %v2446
        %2448 = vdwg.mxu0
        %2449 = vmatpush.bf16.msra.mxu0 %v2279
        %2450 = vmatpush.bf16.msra.mxu0 %v2277
        %2451 = vmatpush.bf16.msra.mxu0 %v2275
        %2452 = vmatpush.bf16.msra.mxu0 %v2273
        %2453 = vmatpush.bf16.msra.mxu0 %v2271
        %2454 = vmatpush.bf16.msra.mxu0 %v2269
        %2455 = vmatpush.bf16.msra.mxu0 %v2267
        %2456 = vmatpush.bf16.msra.mxu0 %v2265
        %2457 = vmatmul.bf16.gmra.mxu0 %v1809
        %v2458 = vpop.f32.mrf.mxu0
        %v2459 = vadd.f32 %v2445, %v2458
        %v2460 = vpop.f32.mrf.mxu0
        %v2461 = vadd.f32 %v2447, %v2460
        %2462 = vdwg.mxu0
        %2463 = vmatpush.bf16.msra.mxu0 %v2295
        %2464 = vmatpush.bf16.msra.mxu0 %v2293
        %2465 = vmatpush.bf16.msra.mxu0 %v2291
        %2466 = vmatpush.bf16.msra.mxu0 %v2289
        %2467 = vmatpush.bf16.msra.mxu0 %v2287
        %2468 = vmatpush.bf16.msra.mxu0 %v2285
        %2469 = vmatpush.bf16.msra.mxu0 %v2283
        %2470 = vmatpush.bf16.msra.mxu0 %v2281
        %2471 = vmatmul.bf16.gmra.mxu0 %v1810
        %v2472 = vpop.f32.mrf.mxu0
        %v2473 = vadd.f32 %v2459, %v2472
        %v2474 = vpop.f32.mrf.mxu0
        %v2475 = vadd.f32 %v2461, %v2474
        %2476 = vdwg.mxu0
        %2477 = vmatpush.bf16.msra.mxu0 %v2216
        %2478 = vmatpush.bf16.msra.mxu0 %v2214
        %2479 = vmatpush.bf16.msra.mxu0 %v2212
        %2480 = vmatpush.bf16.msra.mxu0 %v2210
        %2481 = vmatpush.bf16.msra.mxu0 %v2208
        %2482 = vmatpush.bf16.msra.mxu0 %v2206
        %2483 = vmatpush.bf16.msra.mxu0 %v2204
        %2484 = vmatpush.bf16.msra.mxu0 %v2202
        %2485 = vmatmul.bf16.gmra.mxu0 %v1805
        %v2486 = vpop.f32.mrf.mxu0
        %v2487 = vadd.f32 %v1910, %v2486
        %v2488 = vpop.f32.mrf.mxu0
        %v2489 = vadd.f32 %v1910, %v2488
        %2490 = vdwg.mxu0
        %2491 = vmatpush.bf16.msra.mxu0 %v2232
        %2492 = vmatpush.bf16.msra.mxu0 %v2230
        %2493 = vmatpush.bf16.msra.mxu0 %v2228
        %2494 = vmatpush.bf16.msra.mxu0 %v2226
        %2495 = vmatpush.bf16.msra.mxu0 %v2224
        %2496 = vmatpush.bf16.msra.mxu0 %v2222
        %2497 = vmatpush.bf16.msra.mxu0 %v2220
        %2498 = vmatpush.bf16.msra.mxu0 %v2218
        %2499 = vmatmul.bf16.gmra.mxu0 %v1806
        %v2500 = vpop.f32.mrf.mxu0
        %v2501 = vadd.f32 %v2487, %v2500
        %v2502 = vpop.f32.mrf.mxu0
        %v2503 = vadd.f32 %v2489, %v2502
        %2504 = vdwg.mxu0
        %2505 = vmatpush.bf16.msra.mxu0 %v2248
        %2506 = vmatpush.bf16.msra.mxu0 %v2246
        %2507 = vmatpush.bf16.msra.mxu0 %v2244
        %2508 = vmatpush.bf16.msra.mxu0 %v2242
        %2509 = vmatpush.bf16.msra.mxu0 %v2240
        %2510 = vmatpush.bf16.msra.mxu0 %v2238
        %2511 = vmatpush.bf16.msra.mxu0 %v2236
        %2512 = vmatpush.bf16.msra.mxu0 %v2234
        %2513 = vmatmul.bf16.gmra.mxu0 %v1807
        %v2514 = vpop.f32.mrf.mxu0
        %v2515 = vadd.f32 %v2501, %v2514
        %v2516 = vpop.f32.mrf.mxu0
        %v2517 = vadd.f32 %v2503, %v2516
        %2518 = vdwg.mxu0
        %2519 = vmatpush.bf16.msra.mxu0 %v2264
        %2520 = vmatpush.bf16.msra.mxu0 %v2262
        %2521 = vmatpush.bf16.msra.mxu0 %v2260
        %2522 = vmatpush.bf16.msra.mxu0 %v2258
        %2523 = vmatpush.bf16.msra.mxu0 %v2256
        %2524 = vmatpush.bf16.msra.mxu0 %v2254
        %2525 = vmatpush.bf16.msra.mxu0 %v2252
        %2526 = vmatpush.bf16.msra.mxu0 %v2250
        %2527 = vmatmul.bf16.gmra.mxu0 %v1808
        %v2528 = vpop.f32.mrf.mxu0
        %v2529 = vadd.f32 %v2515, %v2528
        %v2530 = vpop.f32.mrf.mxu0
        %v2531 = vadd.f32 %v2517, %v2530
        %2532 = vdwg.mxu0
        %2533 = vmatpush.bf16.msra.mxu0 %v2280
        %2534 = vmatpush.bf16.msra.mxu0 %v2278
        %2535 = vmatpush.bf16.msra.mxu0 %v2276
        %2536 = vmatpush.bf16.msra.mxu0 %v2274
        %2537 = vmatpush.bf16.msra.mxu0 %v2272
        %2538 = vmatpush.bf16.msra.mxu0 %v2270
        %2539 = vmatpush.bf16.msra.mxu0 %v2268
        %2540 = vmatpush.bf16.msra.mxu0 %v2266
        %2541 = vmatmul.bf16.gmra.mxu0 %v1809
        %v2542 = vpop.f32.mrf.mxu0
        %v2543 = vadd.f32 %v2529, %v2542
        %v2544 = vpop.f32.mrf.mxu0
        %v2545 = vadd.f32 %v2531, %v2544
        %2546 = vdwg.mxu0
        %2547 = vmatpush.bf16.msra.mxu0 %v2296
        %2548 = vmatpush.bf16.msra.mxu0 %v2294
        %2549 = vmatpush.bf16.msra.mxu0 %v2292
        %2550 = vmatpush.bf16.msra.mxu0 %v2290
        %2551 = vmatpush.bf16.msra.mxu0 %v2288
        %2552 = vmatpush.bf16.msra.mxu0 %v2286
        %2553 = vmatpush.bf16.msra.mxu0 %v2284
        %2554 = vmatpush.bf16.msra.mxu0 %v2282
        %2555 = vmatmul.bf16.gmra.mxu0 %v1810
        %v2556 = vpop.f32.mrf.mxu0
        %v2557 = vadd.f32 %v2543, %v2556
        %v2558 = vpop.f32.mrf.mxu0
        %v2559 = vadd.f32 %v2545, %v2558
        %2560 = vdwg.mxu0
        %2561 = vst [vmem:[%s265] sm:$0xff] %v2473
        %2562 = vst [vmem:[%s265 + $0x8] sm:$0xff] %v2557
        %2563 = vst [vmem:[%s265 + $0x10] sm:$0xff] %v2475
        %2564 = vst [vmem:[%s265 + $0x18] sm:$0xff] %v2559
        %s2565 = smul.u32 2, %s18
        %p2566 = scmp.lt.s32.totalorder %s2565, 3
        %s2567 = scalar_select %p2566, %s2565, 3
        %s2568 = smul.addr %s2567, 2
        %s2569 = smul.addr %s2568, 8
        %s2570 = scalar_lea.vmem %s5, %s2569
        // Predicated region
        $region49: #{_lambda_.1} parent=39 // pred_check
          %p2571 = pneg %p146
        $region50: #{_lambda_.1} parent=39 // pred_check_branch
          %2573 = sbr.rel (%p2571) target = $region52
        $region51: #{_lambda_.1} parent=39 // pred_region
          %s2574 = smul.u32 2, %s18
        $region52: #{_lambda_.1} parent=39 // pred_fallthru
          _
      $region40: #{_lambda_.1} parent=5 // pred_fallthru
        _
      %p2575 = scmp.le.s32.totalorder 2, %s13
      // Predicated region
      $region53: #{_lambda_.1} parent=5 // pred_check
        %p2576 = pneg %p2575
      $region54: #{_lambda_.1} parent=5 // pred_check_branch
        %2578 = sbr.rel (%p2576) target = $region56
      $region55: #{_lambda_.1} parent=5 // pred_region
        %s2579 = ssub.s32 %s13, 2
        // Predicated region
        $region57: #{_lambda_.1} parent=55 // pred_check
          %p2580 = pneg %p152
        $region58: #{_lambda_.1} parent=55 // pred_check_branch
          %2582 = sbr.rel (%p2580) target = $region60
        $region59: #{_lambda_.1} parent=55 // pred_region
          %s2583 = smul.u32 2, %s19
          %p2584 = scmp.lt.s32.totalorder %s2583, 3
          %s2585 = scalar_select %p2584, %s2583, 3
          %s2586 = smul.addr %s2585, 2
          %s2587 = smul.addr %s2586, 8
          %s2588 = scalar_lea.vmem %s5, %s2587
        $region60: #{_lambda_.1} parent=55 // pred_fallthru
          _
      $region56: #{_lambda_.1} parent=5 // pred_fallthru
        _
    $region6: #{_lambda_.1} parent=1 // loop_footer
      %s17 = sadd.s32 1, %s13
    $region7: #{_lambda_.1} parent=1 // loop_footer_branch
      %12 = sbr.rel target = $region3
    $region8: #{_lambda_.1} parent=1 // loop_exit
      _
    %2589 = vsyncpa [#allocation3], 1
    %s2590 = scalar_lea.sflag [#allocation3], 1
    %2591 = vsyncpa %s2590, 1
    %2592 = vsyncpa [#allocation5], 1

</llo_original>
